<compile_context>
chip_gen: v6e
topology: v6e:2x2x1
jax: 0.10.0
libtpu: 0.0.40
codegen_flags: <defaults>
</compile_context>

<pallas_src>
import functools

import jax
import jax.numpy as jnp
from jax import lax
from jax.experimental import pallas as pl
from jax.experimental.pallas import tpu as pltpu

EPS = 1e-5


# ------------------------------ in-kernel im2col ----------------------------
def _tap_stack(img, mask_ref, dil, W, L):
    """im2col for a 3x3 conv with padding=dil, dilation=dil.

    img     : (C, L) f32, lane p = b_local*HW + h*W + w.
    mask_ref: (9, L) f32 {0,1} validity mask (precomputed in the wrapper).
    Returns (9*C, L) f32; row k*C + c holds channel c of tap k = ky*3 + kx,
    i.e. img[c, h + dil*(ky-1), w + dil*(kx-1)] with zeros outside the HxW
    image (PyTorch zero padding of the conv input).
    """
    taps = []
    for ky in range(3):
        for kx in range(3):
            dy = dil * (ky - 1)
            dx = dil * (kx - 1)
            s = dy * W + dx
            if s == 0:                      # center tap (dy == dx == 0)
                taps.append(img)
                continue
            # tap[p] = img[p + s]; wrapped / out-of-image lanes are zeroed by
            # the mask.  XLU lane rotation -> co-issues with VPU/MXU work.
            t = pltpu.roll(img, shift=(-s) % L, axis=1)
            k = ky * 3 + kx
            taps.append(t * mask_ref[k:k + 1, :])
    return jnp.concatenate(taps, axis=0)    # (9*C, L)


# --------------------------------- kernel ------------------------------------
def _resdil_kernel(x_ref, w1_ref, b1_ref, m1_ref, w2_ref, b2_ref, m2_ref,
                   o_ref, *, W, dil):
    """One batch-group (bt fused batch elements along the lane axis).

    x_ref : (1, C_pad, L)   f32 input, lane-dense (L = bt*H*W)
    w1_ref: (C_pad, 9*C_pad) bf16 conv1 weight with BN1 scale folded in
    b1_ref: (C_pad, 1)       f32 folded BN1 bias
    m1_ref: (9, L)           f32 validity masks for dilation 1
    w2_ref: (C_pad, 9*C_pad) bf16 conv2 (dilated) weight with BN2 folded in
    b2_ref: (C_pad, 1)       f32 folded BN2 bias
    m2_ref: (9, L)           f32 validity masks for dilation `dil`
    o_ref : (1, C_pad, L)    f32
    """
    x = x_ref[0]                                            # (C_pad, L) f32
    L = x.shape[1]

    # conv1 (3x3, pad 1) + BN1 (folded) + ReLU : single K=9*C_pad MXU matmul.
    t1 = _tap_stack(x, m1_ref, 1, W, L).astype(jnp.bfloat16)
    y1 = jnp.maximum(
        jnp.dot(w1_ref[...], t1, preferred_element_type=jnp.float32)
        + b1_ref[...], 0.0)                                 # (C_pad, L) f32

    # conv2 (3x3, pad=dil, dilation=dil) + BN2 (folded) : single matmul.
    t2 = _tap_stack(y1, m2_ref, dil, W, L).astype(jnp.bfloat16)
    z = jnp.dot(w2_ref[...], t2, preferred_element_type=jnp.float32) + b2_ref[...]

    # residual add + final ReLU (f32), lane-dense store.
    o_ref[...] = jnp.maximum(x + z, 0.0)[None].astype(o_ref.dtype)


# --------------------------------- wrapper -----------------------------------
def _fold_conv_bn(w_oihw, gamma, beta, mean, var, eps=EPS):
    """Fold eval-mode BatchNorm into an im2col conv weight.

    Returns a bf16 (C_out, 9*C_in) weight whose column index is
    (ky*3+kx)*C_in + ci (matching _tap_stack's row order) and an f32
    (C_out, 1) bias.
    """
    co = w_oihw.shape[0]
    scale = gamma / jnp.sqrt(var + eps)
    wf = jnp.transpose(w_oihw, (0, 2, 3, 1)).reshape(co, -1) * scale[:, None]
    bias = (beta - mean * scale).reshape(co, 1)
    return wf.astype(jnp.bfloat16), bias.astype(jnp.float32)


def _make_masks(H, W, dil, bt):
    """(9, bt*H*W) f32 {0,1}: mask[k, b*HW + h*W + w] = 1 iff the tap
    (h + dil*(ky-1), w + dil*(kx-1)) lies inside the HxW image."""
    hh = jnp.repeat(jnp.arange(H), W)                       # (HW,)
    ww = jnp.tile(jnp.arange(W), H)                         # (HW,)
    rows = []
    for ky in range(3):
        for kx in range(3):
            dy = dil * (ky - 1)
            dx = dil * (kx - 1)
            ok = ((hh + dy >= 0) & (hh + dy < H) &
                  (ww + dx >= 0) & (ww + dx < W))
            rows.append(ok)
    m = jnp.stack(rows).astype(jnp.float32)                 # (9, HW)
    return jnp.tile(m, (1, bt))                             # (9, bt*HW)


def _pad_chan(v, c_pad, fill=0.0):
    return jnp.pad(v, (0, c_pad - v.shape[0]), constant_values=fill)


def resdil_forward(x_nchw, params, dil=2, batch_tile=None):
    """x_nchw: (N, C, H, W) float32. Returns (N, C, H, W)."""
    N, C, H, W = x_nchw.shape
    assert dil < W, "dilation must be smaller than image width"
    HW = H * W
    C_pad = ((C + 15) // 16) * 16          # f32 sublane 8 / bf16 sublane 16
    dC = C_pad - C

    # Fuse batch elements along the lane axis (amortize per-step overhead,
    # widen MXU N dim / stores) while keeping the lane block modest.
    if batch_tile is None:
        batch_tile = 1
        for cand in range(min(N, max(1, 4096 // HW)), 0, -1):
            if N % cand == 0:
                batch_tile = cand
                break
    bt = batch_tile
    assert N % bt == 0
    G = N // bt
    L = bt * HW

    # ---- fold BN into bf16 weights / f32 biases, with channel padding ------
    w1p = jnp.pad(params["w1"], ((0, dC), (0, dC), (0, 0), (0, 0)))
    w2p = jnp.pad(params["w2"], ((0, dC), (0, dC), (0, 0), (0, 0)))
    w1f, bias1 = _fold_conv_bn(w1p,
                               _pad_chan(params["bn1_gamma"], C_pad),
                               _pad_chan(params["bn1_beta"], C_pad),
                               _pad_chan(params["bn1_mean"], C_pad),
                               _pad_chan(params["bn1_var"], C_pad, 1.0))
    w2f, bias2 = _fold_conv_bn(w2p,
                               _pad_chan(params["bn2_gamma"], C_pad),
                               _pad_chan(params["bn2_beta"], C_pad),
                               _pad_chan(params["bn2_mean"], C_pad),
                               _pad_chan(params["bn2_var"], C_pad, 1.0))

    # Precomputed zero-padding masks (pure functions of H, W, dil).
    mk1 = _make_masks(H, W, 1, bt)
    mk2 = _make_masks(H, W, dil, bt)

    # Lane-dense activation layout: (G, C_pad, bt*HW), lane = b*HW + h*W + w.
    xp = jnp.pad(x_nchw, ((0, 0), (0, dC), (0, 0), (0, 0))).reshape(N, C_pad, HW)
    xg = xp.reshape(G, bt, C_pad, HW).transpose(0, 2, 1, 3).reshape(G, C_pad, L)

    full = lambda a: pl.BlockSpec(a.shape, lambda g: (0,) * a.ndim)

    out = pl.pallas_call(
        functools.partial(_resdil_kernel, W=W, dil=dil),
        out_shape=jax.ShapeDtypeStruct((G, C_pad, L), jnp.float32),
        grid=(G,),
        in_specs=[
            pl.BlockSpec((1, C_pad, L), lambda g: (g, 0, 0)),
            full(w1f), full(bias1), full(mk1),
            full(w2f), full(bias2), full(mk2),
        ],
        out_specs=pl.BlockSpec((1, C_pad, L), lambda g: (g, 0, 0)),
        compiler_params=pltpu.CompilerParams(
            dimension_semantics=("parallel",)),   # v7x: 2 TCs split batch groups
    )(xg, w1f, bias1, mk1, w2f, bias2, mk2)

    out = (out.reshape(G, C_pad, bt, HW).transpose(0, 2, 1, 3)
              .reshape(N, C_pad, H, W))
    return out[:, :C]


# ------------------------- pure-JAX reference (check) ------------------------
def resdil_reference(x, params, dil=2):
    def bn(y, g, b, m, v):
        s = (g / jnp.sqrt(v + EPS))[None, :, None, None]
        return (y - m[None, :, None, None]) * s + b[None, :, None, None]

    y = lax.conv_general_dilated(
        x, params["w1"], (1, 1), [(1, 1), (1, 1)],
        dimension_numbers=("NCHW", "OIHW", "NCHW"),
        precision=lax.Precision.HIGHEST)
    y = jnp.maximum(bn(y, params["bn1_gamma"], params["bn1_beta"],
                       params["bn1_mean"], params["bn1_var"]), 0.0)
    y = lax.conv_general_dilated(
        y, params["w2"], (1, 1), [(dil, dil), (dil, dil)],
        rhs_dilation=(dil, dil),
        dimension_numbers=("NCHW", "OIHW", "NCHW"),
        precision=lax.Precision.HIGHEST)
    y = bn(y, params["bn2_gamma"], params["bn2_beta"],
           params["bn2_mean"], params["bn2_var"])
    return jnp.maximum(x + y, 0.0)


# ----------------------------------- main ------------------------------------
if __name__ == "__main__":
    key = jax.random.PRNGKey(0)
    N, C, H, W, DIL = 2, 4, 16, 16, 2
    ks = jax.random.split(key, 11)

    x = jax.random.normal(ks[0], (N, C, H, W), jnp.float32)
    params = {
        # PyTorch Conv2d weights are OIHW, bias=False.
        "w1": 0.1 * jax.random.normal(ks[1], (C, C, 3, 3), jnp.float32),
        "bn1_gamma": 1.0 + 0.1 * jax.random.normal(ks[2], (C,), jnp.float32),
        "bn1_beta": 0.1 * jax.random.normal(ks[3], (C,), jnp.float32),
        "bn1_mean": 0.1 * jax.random.normal(ks[4], (C,), jnp.float32),
        "bn1_var": jnp.abs(jax.random.normal(ks[5], (C,), jnp.float32)) + 0.5,
        "w2": 0.1 * jax.random.normal(ks[6], (C, C, 3, 3), jnp.float32),
        "bn2_gamma": 1.0 + 0.1 * jax.random.normal(ks[7], (C,), jnp.float32),
        "bn2_beta": 0.1 * jax.random.normal(ks[8], (C,), jnp.float32),
        "bn2_mean": 0.1 * jax.random.normal(ks[9], (C,), jnp.float32),
        "bn2_var": jnp.abs(jax.random.normal(ks[10], (C,), jnp.float32)) + 0.5,
    }

    out = jax.block_until_ready(resdil_forward(x, params, dil=DIL))
    ref = resdil_reference(x, params, dil=DIL)

    assert out.shape == (N, C, H, W)
    # Tolerance is loosened vs. the pure-f32 version because the MXU operands
    # are bf16 (accumulation stays f32); structural errors would be >> 5e-2.
    assert jnp.allclose(out, ref, atol=5e-2, rtol=5e-2), "mismatch vs reference"
    print("KERNEL_OK")
</pallas_src>

<mosaic_0001>
module attributes {stable_mosaic.version = 11 : i64} {
  func.func @_resdil_kernel(%arg0: i32, %arg1: memref<1x16x512xf32, #tpu.memory_space<vmem>>, %arg2: memref<16x144xbf16, #tpu.memory_space<vmem>>, %arg3: memref<16x1xf32, #tpu.memory_space<vmem>>, %arg4: memref<9x512xf32, #tpu.memory_space<vmem>>, %arg5: memref<16x144xbf16, #tpu.memory_space<vmem>>, %arg6: memref<16x1xf32, #tpu.memory_space<vmem>>, %arg7: memref<9x512xf32, #tpu.memory_space<vmem>>, %arg8: memref<1x16x512xf32, #tpu.memory_space<vmem>>) attributes {dimension_semantics = [#tpu.dimension_semantics<parallel>], iteration_bounds = array<i64: 1>, scalar_prefetch = 0 : i64, scratch_operands = 0 : i64, tpu.core_type = #tpu.core_type<tc>, window_params = [{transform_indices = @transform_0, window_bounds = array<i64: 1, 16, 512>}, {pipeline_mode = #tpu.pipeline_mode<synchronous>, transform_indices = @transform_1, window_bounds = array<i64: 16, 144>}, {pipeline_mode = #tpu.pipeline_mode<synchronous>, transform_indices = @transform_2, window_bounds = array<i64: 16, 1>}, {pipeline_mode = #tpu.pipeline_mode<synchronous>, transform_indices = @transform_3, window_bounds = array<i64: 9, 512>}, {pipeline_mode = #tpu.pipeline_mode<synchronous>, transform_indices = @transform_4, window_bounds = array<i64: 16, 144>}, {pipeline_mode = #tpu.pipeline_mode<synchronous>, transform_indices = @transform_5, window_bounds = array<i64: 16, 1>}, {pipeline_mode = #tpu.pipeline_mode<synchronous>, transform_indices = @transform_6, window_bounds = array<i64: 9, 512>}, {transform_indices = @transform_7, window_bounds = array<i64: 1, 16, 512>}]} {
    %c0 = arith.constant 0 : index
    %c0_0 = arith.constant 0 : index
    %c0_1 = arith.constant 0 : index
    %0 = vector.load %arg1[%c0, %c0_0, %c0_1] : memref<1x16x512xf32, #tpu.memory_space<vmem>>, vector<1x16x512xf32>
    %1 = vector.shape_cast %0 : vector<1x16x512xf32> to vector<16x512xf32>
    %c17_i32 = arith.constant 17 : i32
    %2 = tpu.dynamic_rotate %1 by %c17_i32 dim 1 : vector<16x512xf32>, i32 -> vector<16x512xf32>
    %c0_2 = arith.constant 0 : index
    %c0_3 = arith.constant 0 : index
    %3 = vector.load %arg4[%c0_2, %c0_3] : memref<9x512xf32, #tpu.memory_space<vmem>>, vector<1x512xf32>
    %4 = vector.broadcast %3 : vector<1x512xf32> to vector<16x512xf32>
    %5 = arith.mulf %2, %4 : vector<16x512xf32>
    %c16_i32 = arith.constant 16 : i32
    %6 = tpu.dynamic_rotate %1 by %c16_i32 dim 1 : vector<16x512xf32>, i32 -> vector<16x512xf32>
    %c1 = arith.constant 1 : index
    %c0_4 = arith.constant 0 : index
    %7 = vector.load %arg4[%c1, %c0_4] : memref<9x512xf32, #tpu.memory_space<vmem>>, vector<1x512xf32>
    %8 = vector.broadcast %7 : vector<1x512xf32> to vector<16x512xf32>
    %9 = arith.mulf %6, %8 : vector<16x512xf32>
    %c15_i32 = arith.constant 15 : i32
    %10 = tpu.dynamic_rotate %1 by %c15_i32 dim 1 : vector<16x512xf32>, i32 -> vector<16x512xf32>
    %c2 = arith.constant 2 : index
    %c0_5 = arith.constant 0 : index
    %11 = vector.load %arg4[%c2, %c0_5] : memref<9x512xf32, #tpu.memory_space<vmem>>, vector<1x512xf32>
    %12 = vector.broadcast %11 : vector<1x512xf32> to vector<16x512xf32>
    %13 = arith.mulf %10, %12 : vector<16x512xf32>
    %c1_i32 = arith.constant 1 : i32
    %14 = tpu.dynamic_rotate %1 by %c1_i32 dim 1 : vector<16x512xf32>, i32 -> vector<16x512xf32>
    %c3 = arith.constant 3 : index
    %c0_6 = arith.constant 0 : index
    %15 = vector.load %arg4[%c3, %c0_6] : memref<9x512xf32, #tpu.memory_space<vmem>>, vector<1x512xf32>
    %16 = vector.broadcast %15 : vector<1x512xf32> to vector<16x512xf32>
    %17 = arith.mulf %14, %16 : vector<16x512xf32>
    %c511_i32 = arith.constant 511 : i32
    %18 = tpu.dynamic_rotate %1 by %c511_i32 dim 1 : vector<16x512xf32>, i32 -> vector<16x512xf32>
    %c5 = arith.constant 5 : index
    %c0_7 = arith.constant 0 : index
    %19 = vector.load %arg4[%c5, %c0_7] : memref<9x512xf32, #tpu.memory_space<vmem>>, vector<1x512xf32>
    %20 = vector.broadcast %19 : vector<1x512xf32> to vector<16x512xf32>
    %21 = arith.mulf %18, %20 : vector<16x512xf32>
    %c497_i32 = arith.constant 497 : i32
    %22 = tpu.dynamic_rotate %1 by %c497_i32 dim 1 : vector<16x512xf32>, i32 -> vector<16x512xf32>
    %c6 = arith.constant 6 : index
    %c0_8 = arith.constant 0 : index
    %23 = vector.load %arg4[%c6, %c0_8] : memref<9x512xf32, #tpu.memory_space<vmem>>, vector<1x512xf32>
    %24 = vector.broadcast %23 : vector<1x512xf32> to vector<16x512xf32>
    %25 = arith.mulf %22, %24 : vector<16x512xf32>
    %c496_i32 = arith.constant 496 : i32
    %26 = tpu.dynamic_rotate %1 by %c496_i32 dim 1 : vector<16x512xf32>, i32 -> vector<16x512xf32>
    %c7 = arith.constant 7 : index
    %c0_9 = arith.constant 0 : index
    %27 = vector.load %arg4[%c7, %c0_9] : memref<9x512xf32, #tpu.memory_space<vmem>>, vector<1x512xf32>
    %28 = vector.broadcast %27 : vector<1x512xf32> to vector<16x512xf32>
    %29 = arith.mulf %26, %28 : vector<16x512xf32>
    %c495_i32 = arith.constant 495 : i32
    %30 = tpu.dynamic_rotate %1 by %c495_i32 dim 1 : vector<16x512xf32>, i32 -> vector<16x512xf32>
    %c8 = arith.constant 8 : index
    %c0_10 = arith.constant 0 : index
    %31 = vector.load %arg4[%c8, %c0_10] : memref<9x512xf32, #tpu.memory_space<vmem>>, vector<1x512xf32>
    %32 = vector.broadcast %31 : vector<1x512xf32> to vector<16x512xf32>
    %33 = arith.mulf %30, %32 : vector<16x512xf32>
    %34 = tpu.concatenate %5, %9, %13, %17, %1, %21, %25, %29, %33 in 0 : vector<16x512xf32>, vector<16x512xf32>, vector<16x512xf32>, vector<16x512xf32>, vector<16x512xf32>, vector<16x512xf32>, vector<16x512xf32>, vector<16x512xf32>, vector<16x512xf32> -> vector<144x512xf32>
    %35 = arith.truncf %34 : vector<144x512xf32> to vector<144x512xbf16>
    %c0_11 = arith.constant 0 : index
    %c0_12 = arith.constant 0 : index
    %36 = vector.load %arg2[%c0_11, %c0_12] : memref<16x144xbf16, #tpu.memory_space<vmem>>, vector<16x144xbf16>
    %cst = arith.constant dense<0.000000e+00> : vector<16x512xf32>
    %37 = tpu.matmul %36, %35, %cst {dimension_numbers = #tpu.dot_dimension_numbers<[1], [0], [0], [1], [0, 0, 1, 1], [], []>} : vector<16x144xbf16>, vector<144x512xbf16>, vector<16x512xf32> -> vector<16x512xf32>
    %c0_13 = arith.constant 0 : index
    %c0_14 = arith.constant 0 : index
    %38 = vector.load %arg3[%c0_13, %c0_14] : memref<16x1xf32, #tpu.memory_space<vmem>>, vector<16x1xf32>
    %39 = vector.broadcast %38 : vector<16x1xf32> to vector<16x512xf32>
    %40 = arith.addf %37, %39 : vector<16x512xf32>
    %cst_15 = arith.constant 0.000000e+00 : f32
    %41 = vector.broadcast %cst_15 : f32 to vector<16x512xf32>
    %42 = arith.maximumf %40, %41 : vector<16x512xf32>
    %c34_i32 = arith.constant 34 : i32
    %43 = tpu.dynamic_rotate %42 by %c34_i32 dim 1 : vector<16x512xf32>, i32 -> vector<16x512xf32>
    %c0_16 = arith.constant 0 : index
    %c0_17 = arith.constant 0 : index
    %44 = vector.load %arg7[%c0_16, %c0_17] : memref<9x512xf32, #tpu.memory_space<vmem>>, vector<1x512xf32>
    %45 = vector.broadcast %44 : vector<1x512xf32> to vector<16x512xf32>
    %46 = arith.mulf %43, %45 : vector<16x512xf32>
    %c32_i32 = arith.constant 32 : i32
    %47 = tpu.dynamic_rotate %42 by %c32_i32 dim 1 : vector<16x512xf32>, i32 -> vector<16x512xf32>
    %c1_18 = arith.constant 1 : index
    %c0_19 = arith.constant 0 : index
    %48 = vector.load %arg7[%c1_18, %c0_19] : memref<9x512xf32, #tpu.memory_space<vmem>>, vector<1x512xf32>
    %49 = vector.broadcast %48 : vector<1x512xf32> to vector<16x512xf32>
    %50 = arith.mulf %47, %49 : vector<16x512xf32>
    %c30_i32 = arith.constant 30 : i32
    %51 = tpu.dynamic_rotate %42 by %c30_i32 dim 1 : vector<16x512xf32>, i32 -> vector<16x512xf32>
    %c2_20 = arith.constant 2 : index
    %c0_21 = arith.constant 0 : index
    %52 = vector.load %arg7[%c2_20, %c0_21] : memref<9x512xf32, #tpu.memory_space<vmem>>, vector<1x512xf32>
    %53 = vector.broadcast %52 : vector<1x512xf32> to vector<16x512xf32>
    %54 = arith.mulf %51, %53 : vector<16x512xf32>
    %c2_i32 = arith.constant 2 : i32
    %55 = tpu.dynamic_rotate %42 by %c2_i32 dim 1 : vector<16x512xf32>, i32 -> vector<16x512xf32>
    %c3_22 = arith.constant 3 : index
    %c0_23 = arith.constant 0 : index
    %56 = vector.load %arg7[%c3_22, %c0_23] : memref<9x512xf32, #tpu.memory_space<vmem>>, vector<1x512xf32>
    %57 = vector.broadcast %56 : vector<1x512xf32> to vector<16x512xf32>
    %58 = arith.mulf %55, %57 : vector<16x512xf32>
    %c510_i32 = arith.constant 510 : i32
    %59 = tpu.dynamic_rotate %42 by %c510_i32 dim 1 : vector<16x512xf32>, i32 -> vector<16x512xf32>
    %c5_24 = arith.constant 5 : index
    %c0_25 = arith.constant 0 : index
    %60 = vector.load %arg7[%c5_24, %c0_25] : memref<9x512xf32, #tpu.memory_space<vmem>>, vector<1x512xf32>
    %61 = vector.broadcast %60 : vector<1x512xf32> to vector<16x512xf32>
    %62 = arith.mulf %59, %61 : vector<16x512xf32>
    %c482_i32 = arith.constant 482 : i32
    %63 = tpu.dynamic_rotate %42 by %c482_i32 dim 1 : vector<16x512xf32>, i32 -> vector<16x512xf32>
    %c6_26 = arith.constant 6 : index
    %c0_27 = arith.constant 0 : index
    %64 = vector.load %arg7[%c6_26, %c0_27] : memref<9x512xf32, #tpu.memory_space<vmem>>, vector<1x512xf32>
    %65 = vector.broadcast %64 : vector<1x512xf32> to vector<16x512xf32>
    %66 = arith.mulf %63, %65 : vector<16x512xf32>
    %c480_i32 = arith.constant 480 : i32
    %67 = tpu.dynamic_rotate %42 by %c480_i32 dim 1 : vector<16x512xf32>, i32 -> vector<16x512xf32>
    %c7_28 = arith.constant 7 : index
    %c0_29 = arith.constant 0 : index
    %68 = vector.load %arg7[%c7_28, %c0_29] : memref<9x512xf32, #tpu.memory_space<vmem>>, vector<1x512xf32>
    %69 = vector.broadcast %68 : vector<1x512xf32> to vector<16x512xf32>
    %70 = arith.mulf %67, %69 : vector<16x512xf32>
    %c478_i32 = arith.constant 478 : i32
    %71 = tpu.dynamic_rotate %42 by %c478_i32 dim 1 : vector<16x512xf32>, i32 -> vector<16x512xf32>
    %c8_30 = arith.constant 8 : index
    %c0_31 = arith.constant 0 : index
    %72 = vector.load %arg7[%c8_30, %c0_31] : memref<9x512xf32, #tpu.memory_space<vmem>>, vector<1x512xf32>
    %73 = vector.broadcast %72 : vector<1x512xf32> to vector<16x512xf32>
    %74 = arith.mulf %71, %73 : vector<16x512xf32>
    %75 = tpu.concatenate %46, %50, %54, %58, %42, %62, %66, %70, %74 in 0 : vector<16x512xf32>, vector<16x512xf32>, vector<16x512xf32>, vector<16x512xf32>, vector<16x512xf32>, vector<16x512xf32>, vector<16x512xf32>, vector<16x512xf32>, vector<16x512xf32> -> vector<144x512xf32>
    %76 = arith.truncf %75 : vector<144x512xf32> to vector<144x512xbf16>
    %c0_32 = arith.constant 0 : index
    %c0_33 = arith.constant 0 : index
    %77 = vector.load %arg5[%c0_32, %c0_33] : memref<16x144xbf16, #tpu.memory_space<vmem>>, vector<16x144xbf16>
    %cst_34 = arith.constant dense<0.000000e+00> : vector<16x512xf32>
    %78 = tpu.matmul %77, %76, %cst_34 {dimension_numbers = #tpu.dot_dimension_numbers<[1], [0], [0], [1], [0, 0, 1, 1], [], []>} : vector<16x144xbf16>, vector<144x512xbf16>, vector<16x512xf32> -> vector<16x512xf32>
    %c0_35 = arith.constant 0 : index
    %c0_36 = arith.constant 0 : index
    %79 = vector.load %arg6[%c0_35, %c0_36] : memref<16x1xf32, #tpu.memory_space<vmem>>, vector<16x1xf32>
    %80 = vector.broadcast %79 : vector<16x1xf32> to vector<16x512xf32>
    %81 = arith.addf %78, %80 : vector<16x512xf32>
    %82 = arith.addf %1, %81 : vector<16x512xf32>
    %cst_37 = arith.constant 0.000000e+00 : f32
    %83 = vector.broadcast %cst_37 : f32 to vector<16x512xf32>
    %84 = arith.maximumf %82, %83 : vector<16x512xf32>
    %85 = vector.shape_cast %84 : vector<16x512xf32> to vector<1x16x512xf32>
    %c0_38 = arith.constant 0 : index
    %c0_39 = arith.constant 0 : index
    %c0_40 = arith.constant 0 : index
    %86 = vector.load %arg8[%c0_38, %c0_39, %c0_40] : memref<1x16x512xf32, #tpu.memory_space<vmem>>, vector<1x16x512xf32>
    tpu.vector_store %arg8[%c0_38, %c0_39, %c0_40], %85 {strides = array<i32>} : memref<1x16x512xf32, #tpu.memory_space<vmem>>, vector<1x16x512xf32>,
    return
  }
  func.func @transform_0(%arg0: i32) -> (i32, i32, i32) {
    %c0_i32 = arith.constant 0 : i32
    %c0_i32_0 = arith.constant 0 : i32
    %c0_i32_1 = arith.constant 0 : i32
    return %arg0, %c0_i32, %c0_i32_0 : i32, i32, i32
  }
  func.func @transform_1(%arg0: i32) -> (i32, i32) {
    %c0_i32 = arith.constant 0 : i32
    %c0_i32_0 = arith.constant 0 : i32
    %c0_i32_1 = arith.constant 0 : i32
    return %c0_i32, %c0_i32_0 : i32, i32
  }
  func.func @transform_2(%arg0: i32) -> (i32, i32) {
    %c0_i32 = arith.constant 0 : i32
    %c0_i32_0 = arith.constant 0 : i32
    %c0_i32_1 = arith.constant 0 : i32
    return %c0_i32, %c0_i32_0 : i32, i32
  }
  func.func @transform_3(%arg0: i32) -> (i32, i32) {
    %c0_i32 = arith.constant 0 : i32
    %c0_i32_0 = arith.constant 0 : i32
    %c0_i32_1 = arith.constant 0 : i32
    return %c0_i32, %c0_i32_0 : i32, i32
  }
  func.func @transform_4(%arg0: i32) -> (i32, i32) {
    %c0_i32 = arith.constant 0 : i32
    %c0_i32_0 = arith.constant 0 : i32
    %c0_i32_1 = arith.constant 0 : i32
    return %c0_i32, %c0_i32_0 : i32, i32
  }
  func.func @transform_5(%arg0: i32) -> (i32, i32) {
    %c0_i32 = arith.constant 0 : i32
    %c0_i32_0 = arith.constant 0 : i32
    %c0_i32_1 = arith.constant 0 : i32
    return %c0_i32, %c0_i32_0 : i32, i32
  }
  func.func @transform_6(%arg0: i32) -> (i32, i32) {
    %c0_i32 = arith.constant 0 : i32
    %c0_i32_0 = arith.constant 0 : i32
    %c0_i32_1 = arith.constant 0 : i32
    return %c0_i32, %c0_i32_0 : i32, i32
  }
  func.func @transform_7(%arg0: i32) -> (i32, i32, i32) {
    %c0_i32 = arith.constant 0 : i32
    %c0_i32_0 = arith.constant 0 : i32
    %c0_i32_1 = arith.constant 0 : i32
    return %arg0, %c0_i32, %c0_i32_0 : i32, i32, i32
  }
}

</mosaic_0001>

<llo_original>
// kernel: tpu_custom_call.1
$region0: #{tpu_custom_call.1}
  #allocation0 [shape = 'u32[]', space=smem, size = 0x4, offset = 0x4, fixed_abs, tag = 'smem constant byte address 0x4 - core index']
  #allocation1 [shape = 'u32[144,128]{1,0:T(1,128)}', space=vmem, size = 0x12000, scoped, tag = 'internal scratch']
  %s0 = inlined_call_operand.hbm [shape: f32[1,16,512], index: 0, kind: input, shape index: {}]
  %s1 = inlined_call_operand.vmem [shape: bf16[16,144], index: 1, kind: input, shape index: {}]
  %s2 = inlined_call_operand.vmem [shape: f32[16,1], index: 2, kind: input, shape index: {}]
  %s3 = inlined_call_operand.hbm [shape: f32[9,512], index: 3, kind: input, shape index: {}]
  %s4 = inlined_call_operand.vmem [shape: bf16[16,144], index: 4, kind: input, shape index: {}]
  %s5 = inlined_call_operand.vmem [shape: f32[16,1], index: 5, kind: input, shape index: {}]
  %s6 = inlined_call_operand.hbm [shape: f32[9,512], index: 6, kind: input, shape index: {}]
  %s7 = inlined_call_operand.hbm [shape: f32[1,16,512], index: 7, kind: output, shape index: {}]
  %s8 = sld [smem:[#allocation0]]
  $region50: #{tpu_custom_call.1} parent=0
    _
  %s10 = ssub.s32 1, %s8
  %s11 = scalar_select 0, %s10, %s8
  $region1: #{tpu_custom_call.1} parent=0
    #allocation2 [shape = 'u8[32768]{0}', space=vmem, size = 0x8000, scoped, tag = 'input window, operand 0, single buffered']
    #allocation3 [shape = 's32[1]{0}', space=sflag, size = 0x4, scoped, tag = 'scoped memory for tpu_custom_call.1']
    #allocation4 [shape = 's32[1]{0}', space=sflag, size = 0x4, scoped, tag = 'scoped memory for tpu_custom_call.1']
    #allocation5 [shape = 'u8[32768]{0}', space=vmem, size = 0x8000, scoped, tag = 'input window, operand 3, single buffered']
    #allocation6 [shape = 's32[1]{0}', space=sflag, size = 0x4, scoped, tag = 'scoped memory for tpu_custom_call.1']
    #allocation7 [shape = 'u8[32768]{0}', space=vmem, size = 0x8000, scoped, tag = 'input window, operand 6, single buffered']
    #allocation8 [shape = 'u8[32768]{0}', space=vmem, size = 0x8000, scoped, tag = 'output window, operand 0, single buffered']
    %12 = vsyncpa [#allocation3], 0
    %13 = vsyncpa [#allocation6], 0
    %14 = vsyncpa [#allocation4], 0
    // Predicated region
    $region2: #{tpu_custom_call.1} parent=1 // pred_check
      _
    $region3: #{tpu_custom_call.1} parent=1 // pred_check_branch
      %16 = sbr.rel (0) target = $region5
    $region4: #{tpu_custom_call.1} parent=1 // pred_region
      %s18 = ssub.s32 1024, 1024
      %19 = vsyncadd [#allocation3], %s18
      %s20 = sshll.u32 [#allocation2], 4
      %s21 = int_to_ptr.vmem [resolvable:$true] %s20
      %26 = dma.hbm_to_vmem [thread:$0]  %s0, 1024, %s21, [#allocation3], 512, 512, 32
    $region5: #{tpu_custom_call.1} parent=1 // pred_fallthru
      _
    // Predicated region
    $region6: #{tpu_custom_call.1} parent=1 // pred_check
      _
    $region7: #{tpu_custom_call.1} parent=1 // pred_check_branch
      %28 = sbr.rel (0) target = $region9
    $region8: #{tpu_custom_call.1} parent=1 // pred_region
      _
    $region9: #{tpu_custom_call.1} parent=1 // pred_fallthru
      _
    // Predicated region
    $region10: #{tpu_custom_call.1} parent=1 // pred_check
      _
    $region11: #{tpu_custom_call.1} parent=1 // pred_check_branch
      %30 = sbr.rel (0) target = $region13
    $region12: #{tpu_custom_call.1} parent=1 // pred_region
      _
    $region13: #{tpu_custom_call.1} parent=1 // pred_fallthru
      _
    // Predicated region
    $region14: #{tpu_custom_call.1} parent=1 // pred_check
      _
    $region15: #{tpu_custom_call.1} parent=1 // pred_check_branch
      %32 = sbr.rel (0) target = $region17
    $region16: #{tpu_custom_call.1} parent=1 // pred_region
      %s34 = ssub.s32 1024, 1024
      %35 = vsyncadd [#allocation6], %s34
      %s36 = sshll.u32 [#allocation5], 4
      %s37 = int_to_ptr.vmem [resolvable:$true] %s36
      %42 = dma.hbm_to_vmem [thread:$0]  %s3, 1024, %s37, [#allocation6], 512, 512, 32
    $region17: #{tpu_custom_call.1} parent=1 // pred_fallthru
      _
    // Predicated region
    $region18: #{tpu_custom_call.1} parent=1 // pred_check
      _
    $region19: #{tpu_custom_call.1} parent=1 // pred_check_branch
      %44 = sbr.rel (0) target = $region21
    $region20: #{tpu_custom_call.1} parent=1 // pred_region
      _
    $region21: #{tpu_custom_call.1} parent=1 // pred_fallthru
      _
    // Predicated region
    $region22: #{tpu_custom_call.1} parent=1 // pred_check
      _
    $region23: #{tpu_custom_call.1} parent=1 // pred_check_branch
      %46 = sbr.rel (0) target = $region25
    $region24: #{tpu_custom_call.1} parent=1 // pred_region
      _
    $region25: #{tpu_custom_call.1} parent=1 // pred_fallthru
      _
    // Predicated region
    $region26: #{tpu_custom_call.1} parent=1 // pred_check
      _
    $region27: #{tpu_custom_call.1} parent=1 // pred_check_branch
      %48 = sbr.rel (0) target = $region29
    $region28: #{tpu_custom_call.1} parent=1 // pred_region
      %s50 = ssub.s32 1024, 1024
      %51 = vsyncadd [#allocation6], %s50
      %s52 = sshll.u32 [#allocation7], 4
      %s53 = int_to_ptr.vmem [resolvable:$true] %s52
      %58 = dma.hbm_to_vmem [thread:$0]  %s6, 1024, %s53, [#allocation6], 512, 512, 32
    $region29: #{tpu_custom_call.1} parent=1 // pred_fallthru
      _
    // Predicated region
    $region30: #{tpu_custom_call.1} parent=1 // pred_check
      _
    $region31: #{tpu_custom_call.1} parent=1 // pred_check_branch
      %60 = sbr.rel (0) target = $region33
    $region32: #{tpu_custom_call.1} parent=1 // pred_region
      %61 = dma.done [#allocation3], 1024
    $region33: #{tpu_custom_call.1} parent=1 // pred_fallthru
      _
    // Predicated region
    $region34: #{tpu_custom_call.1} parent=1 // pred_check
      _
    $region35: #{tpu_custom_call.1} parent=1 // pred_check_branch
      %63 = sbr.rel (0) target = $region37
    $region36: #{tpu_custom_call.1} parent=1 // pred_region
      %64 = dma.done [#allocation6], 1024
    $region37: #{tpu_custom_call.1} parent=1 // pred_fallthru
      _
    // Predicated region
    $region38: #{tpu_custom_call.1} parent=1 // pred_check
      _
    $region39: #{tpu_custom_call.1} parent=1 // pred_check_branch
      %66 = sbr.rel (0) target = $region41
    $region40: #{tpu_custom_call.1} parent=1 // pred_region
      %67 = dma.done [#allocation6], 1024
    $region41: #{tpu_custom_call.1} parent=1 // pred_fallthru
      _
    %v69 = vld [vmem:[#allocation2] sm:$0xff]
    %v70 = vld [vmem:[#allocation2 + $0x8] sm:$0xff]
    %v71 = vld [vmem:[#allocation2 + $0x10] sm:$0xff]
    %v72 = vld [vmem:[#allocation2 + $0x18] sm:$0xff]
    %v73 = vld [vmem:[#allocation2 + $0x20] sm:$0xff]
    %v74 = vld [vmem:[#allocation2 + $0x28] sm:$0xff]
    %v75 = vld [vmem:[#allocation2 + $0x30] sm:$0xff]
    %v76 = vld [vmem:[#allocation2 + $0x38] sm:$0xff]
    %77 = vrot.lane.b32.xlu0 %v69, 17
    %v78 = vpop.permute.xlu0 %77
    %79 = vrot.lane.b32.xlu0 %v73, 17
    %v80 = vpop.permute.xlu0 %79
    %81 = vrot.lane.b32.xlu0 %v70, 17
    %v82 = vpop.permute.xlu0 %81
    %83 = vrot.lane.b32.xlu0 %v74, 17
    %v84 = vpop.permute.xlu0 %83
    %85 = vrot.lane.b32.xlu0 %v71, 17
    %v86 = vpop.permute.xlu0 %85
    %87 = vrot.lane.b32.xlu0 %v75, 17
    %v88 = vpop.permute.xlu0 %87
    %89 = vrot.lane.b32.xlu0 %v72, 17
    %v90 = vpop.permute.xlu0 %89
    %91 = vrot.lane.b32.xlu0 %v76, 17
    %v92 = vpop.permute.xlu0 %91
    %v93 = vlaneseq
    %v94 = vand.u32 %v93, 127
    %vm95 = vcmp.lt.s32.totalorder %v94, 17
    %v96 = vsel %vm95, %v86, %v90
    %v97 = vsel %vm95, %v88, %v92
    %v98 = vsel %vm95, %v82, %v86
    %v99 = vsel %vm95, %v84, %v88
    %v100 = vsel %vm95, %v78, %v82
    %v101 = vsel %vm95, %v80, %v84
    %v102 = vsel %vm95, %v90, %v78
    %v103 = vsel %vm95, %v92, %v80
    %v104 = vld [vmem:[#allocation5] ss:$8 sm:$0xf]
    %v106 = vlaneseq
    %v107 = vshrl.u32 %v106, 7
    %v108 = vsub.s32 0, %v107
    %v109 = vrot.slane %v104, %v108
    %v110 = vlaneseq
    %v111 = vshrl.u32 %v110, 7
    %v112 = vsub.s32 1, %v111
    %v113 = vrot.slane %v104, %v112
    %v114 = vlaneseq
    %v115 = vshrl.u32 %v114, 7
    %v116 = vsub.s32 2, %v115
    %v117 = vrot.slane %v104, %v116
    %v118 = vlaneseq
    %v119 = vshrl.u32 %v118, 7
    %v120 = vsub.s32 3, %v119
    %v121 = vrot.slane %v104, %v120
    %v126 = vmul.f32 %v102, %v109
    %v127 = vmul.f32 %v100, %v113
    %v128 = vmul.f32 %v98, %v117
    %v129 = vmul.f32 %v96, %v121
    %v130 = vmul.f32 %v103, %v109
    %v131 = vmul.f32 %v101, %v113
    %v132 = vmul.f32 %v99, %v117
    %v133 = vmul.f32 %v97, %v121
    %134 = vrot.lane.b32.xlu0 %v69, 16
    %v135 = vpop.permute.xlu0 %134
    %136 = vrot.lane.b32.xlu0 %v73, 16
    %v137 = vpop.permute.xlu0 %136
    %138 = vrot.lane.b32.xlu0 %v70, 16
    %v139 = vpop.permute.xlu0 %138
    %140 = vrot.lane.b32.xlu0 %v74, 16
    %v141 = vpop.permute.xlu0 %140
    %142 = vrot.lane.b32.xlu0 %v71, 16
    %v143 = vpop.permute.xlu0 %142
    %144 = vrot.lane.b32.xlu0 %v75, 16
    %v145 = vpop.permute.xlu0 %144
    %146 = vrot.lane.b32.xlu0 %v72, 16
    %v147 = vpop.permute.xlu0 %146
    %148 = vrot.lane.b32.xlu0 %v76, 16
    %v149 = vpop.permute.xlu0 %148
    %vm150 = vcmp.lt.s32.totalorder %v94, 16
    %v151 = vsel %vm150, %v143, %v147
    %v152 = vsel %vm150, %v145, %v149
    %v153 = vsel %vm150, %v139, %v143
    %v154 = vsel %vm150, %v141, %v145
    %v155 = vsel %vm150, %v135, %v139
    %v156 = vsel %vm150, %v137, %v141
    %v157 = vsel %vm150, %v147, %v135
    %v158 = vsel %vm150, %v149, %v137
    %s159 = scalar_lea.vmem [#allocation5], 1
    %v160 = vld [vmem:[%s159] ss:$8 sm:$0xf]
    %v162 = vlaneseq
    %v163 = vshrl.u32 %v162, 7
    %v164 = vsub.s32 0, %v163
    %v165 = vrot.slane %v160, %v164
    %v166 = vlaneseq
    %v167 = vshrl.u32 %v166, 7
    %v168 = vsub.s32 1, %v167
    %v169 = vrot.slane %v160, %v168
    %v170 = vlaneseq
    %v171 = vshrl.u32 %v170, 7
    %v172 = vsub.s32 2, %v171
    %v173 = vrot.slane %v160, %v172
    %v174 = vlaneseq
    %v175 = vshrl.u32 %v174, 7
    %v176 = vsub.s32 3, %v175
    %v177 = vrot.slane %v160, %v176
    %v182 = vmul.f32 %v157, %v165
    %v183 = vmul.f32 %v155, %v169
    %v184 = vmul.f32 %v153, %v173
    %v185 = vmul.f32 %v151, %v177
    %v186 = vmul.f32 %v158, %v165
    %v187 = vmul.f32 %v156, %v169
    %v188 = vmul.f32 %v154, %v173
    %v189 = vmul.f32 %v152, %v177
    %190 = vrot.lane.b32.xlu0 %v69, 15
    %v191 = vpop.permute.xlu0 %190
    %192 = vrot.lane.b32.xlu0 %v73, 15
    %v193 = vpop.permute.xlu0 %192
    %194 = vrot.lane.b32.xlu0 %v70, 15
    %v195 = vpop.permute.xlu0 %194
    %196 = vrot.lane.b32.xlu0 %v74, 15
    %v197 = vpop.permute.xlu0 %196
    %198 = vrot.lane.b32.xlu0 %v71, 15
    %v199 = vpop.permute.xlu0 %198
    %200 = vrot.lane.b32.xlu0 %v75, 15
    %v201 = vpop.permute.xlu0 %200
    %202 = vrot.lane.b32.xlu0 %v72, 15
    %v203 = vpop.permute.xlu0 %202
    %204 = vrot.lane.b32.xlu0 %v76, 15
    %v205 = vpop.permute.xlu0 %204
    %vm206 = vcmp.lt.s32.totalorder %v94, 15
    %v207 = vsel %vm206, %v199, %v203
    %v208 = vsel %vm206, %v201, %v205
    %v209 = vsel %vm206, %v195, %v199
    %v210 = vsel %vm206, %v197, %v201
    %v211 = vsel %vm206, %v191, %v195
    %v212 = vsel %vm206, %v193, %v197
    %v213 = vsel %vm206, %v203, %v191
    %v214 = vsel %vm206, %v205, %v193
    %s215 = scalar_lea.vmem [#allocation5], 2
    %v216 = vld [vmem:[%s215] ss:$8 sm:$0xf]
    %v218 = vlaneseq
    %v219 = vshrl.u32 %v218, 7
    %v220 = vsub.s32 0, %v219
    %v221 = vrot.slane %v216, %v220
    %v222 = vlaneseq
    %v223 = vshrl.u32 %v222, 7
    %v224 = vsub.s32 1, %v223
    %v225 = vrot.slane %v216, %v224
    %v226 = vlaneseq
    %v227 = vshrl.u32 %v226, 7
    %v228 = vsub.s32 2, %v227
    %v229 = vrot.slane %v216, %v228
    %v230 = vlaneseq
    %v231 = vshrl.u32 %v230, 7
    %v232 = vsub.s32 3, %v231
    %v233 = vrot.slane %v216, %v232
    %v238 = vmul.f32 %v213, %v221
    %v239 = vmul.f32 %v211, %v225
    %v240 = vmul.f32 %v209, %v229
    %v241 = vmul.f32 %v207, %v233
    %v242 = vmul.f32 %v214, %v221
    %v243 = vmul.f32 %v212, %v225
    %v244 = vmul.f32 %v210, %v229
    %v245 = vmul.f32 %v208, %v233
    %246 = vrot.lane.b32.xlu0 %v69, 1
    %v247 = vpop.permute.xlu0 %246
    %248 = vrot.lane.b32.xlu0 %v73, 1
    %v249 = vpop.permute.xlu0 %248
    %250 = vrot.lane.b32.xlu0 %v70, 1
    %v251 = vpop.permute.xlu0 %250
    %252 = vrot.lane.b32.xlu0 %v74, 1
    %v253 = vpop.permute.xlu0 %252
    %254 = vrot.lane.b32.xlu0 %v71, 1
    %v255 = vpop.permute.xlu0 %254
    %256 = vrot.lane.b32.xlu0 %v75, 1
    %v257 = vpop.permute.xlu0 %256
    %258 = vrot.lane.b32.xlu0 %v72, 1
    %v259 = vpop.permute.xlu0 %258
    %260 = vrot.lane.b32.xlu0 %v76, 1
    %v261 = vpop.permute.xlu0 %260
    %vm262 = vcmp.lt.s32.totalorder %v94, 1
    %v263 = vsel %vm262, %v255, %v259
    %v264 = vsel %vm262, %v257, %v261
    %v265 = vsel %vm262, %v251, %v255
    %v266 = vsel %vm262, %v253, %v257
    %v267 = vsel %vm262, %v247, %v251
    %v268 = vsel %vm262, %v249, %v253
    %v269 = vsel %vm262, %v259, %v247
    %v270 = vsel %vm262, %v261, %v249
    %s271 = scalar_lea.vmem [#allocation5], 3
    %v272 = vld [vmem:[%s271] ss:$8 sm:$0xf]
    %v274 = vlaneseq
    %v275 = vshrl.u32 %v274, 7
    %v276 = vsub.s32 0, %v275
    %v277 = vrot.slane %v272, %v276
    %v278 = vlaneseq
    %v279 = vshrl.u32 %v278, 7
    %v280 = vsub.s32 1, %v279
    %v281 = vrot.slane %v272, %v280
    %v282 = vlaneseq
    %v283 = vshrl.u32 %v282, 7
    %v284 = vsub.s32 2, %v283
    %v285 = vrot.slane %v272, %v284
    %v286 = vlaneseq
    %v287 = vshrl.u32 %v286, 7
    %v288 = vsub.s32 3, %v287
    %v289 = vrot.slane %v272, %v288
    %v294 = vmul.f32 %v269, %v277
    %v295 = vmul.f32 %v267, %v281
    %v296 = vmul.f32 %v265, %v285
    %v297 = vmul.f32 %v263, %v289
    %v298 = vmul.f32 %v270, %v277
    %v299 = vmul.f32 %v268, %v281
    %v300 = vmul.f32 %v266, %v285
    %v301 = vmul.f32 %v264, %v289
    %302 = vrot.lane.b32.xlu0 %v69, 127
    %v303 = vpop.permute.xlu0 %302
    %304 = vrot.lane.b32.xlu0 %v73, 127
    %v305 = vpop.permute.xlu0 %304
    %306 = vrot.lane.b32.xlu0 %v70, 127
    %v307 = vpop.permute.xlu0 %306
    %308 = vrot.lane.b32.xlu0 %v74, 127
    %v309 = vpop.permute.xlu0 %308
    %310 = vrot.lane.b32.xlu0 %v71, 127
    %v311 = vpop.permute.xlu0 %310
    %312 = vrot.lane.b32.xlu0 %v75, 127
    %v313 = vpop.permute.xlu0 %312
    %314 = vrot.lane.b32.xlu0 %v72, 127
    %v315 = vpop.permute.xlu0 %314
    %316 = vrot.lane.b32.xlu0 %v76, 127
    %v317 = vpop.permute.xlu0 %316
    %vm318 = vcmp.lt.s32.totalorder %v94, 127
    %v319 = vsel %vm318, %v311, %v315
    %v320 = vsel %vm318, %v313, %v317
    %v321 = vsel %vm318, %v307, %v311
    %v322 = vsel %vm318, %v309, %v313
    %v323 = vsel %vm318, %v303, %v307
    %v324 = vsel %vm318, %v305, %v309
    %v325 = vsel %vm318, %v315, %v303
    %v326 = vsel %vm318, %v317, %v305
    %s327 = scalar_lea.vmem [#allocation5], 5
    %v328 = vld [vmem:[%s327] ss:$8 sm:$0xf]
    %v330 = vlaneseq
    %v331 = vshrl.u32 %v330, 7
    %v332 = vsub.s32 0, %v331
    %v333 = vrot.slane %v328, %v332
    %v334 = vlaneseq
    %v335 = vshrl.u32 %v334, 7
    %v336 = vsub.s32 1, %v335
    %v337 = vrot.slane %v328, %v336
    %v338 = vlaneseq
    %v339 = vshrl.u32 %v338, 7
    %v340 = vsub.s32 2, %v339
    %v341 = vrot.slane %v328, %v340
    %v342 = vlaneseq
    %v343 = vshrl.u32 %v342, 7
    %v344 = vsub.s32 3, %v343
    %v345 = vrot.slane %v328, %v344
    %v350 = vmul.f32 %v323, %v333
    %v351 = vmul.f32 %v321, %v337
    %v352 = vmul.f32 %v319, %v341
    %v353 = vmul.f32 %v325, %v345
    %v354 = vmul.f32 %v324, %v333
    %v355 = vmul.f32 %v322, %v337
    %v356 = vmul.f32 %v320, %v341
    %v357 = vmul.f32 %v326, %v345
    %358 = vrot.lane.b32.xlu0 %v69, 113
    %v359 = vpop.permute.xlu0 %358
    %360 = vrot.lane.b32.xlu0 %v73, 113
    %v361 = vpop.permute.xlu0 %360
    %362 = vrot.lane.b32.xlu0 %v70, 113
    %v363 = vpop.permute.xlu0 %362
    %364 = vrot.lane.b32.xlu0 %v74, 113
    %v365 = vpop.permute.xlu0 %364
    %366 = vrot.lane.b32.xlu0 %v71, 113
    %v367 = vpop.permute.xlu0 %366
    %368 = vrot.lane.b32.xlu0 %v75, 113
    %v369 = vpop.permute.xlu0 %368
    %370 = vrot.lane.b32.xlu0 %v72, 113
    %v371 = vpop.permute.xlu0 %370
    %372 = vrot.lane.b32.xlu0 %v76, 113
    %v373 = vpop.permute.xlu0 %372
    %vm374 = vcmp.lt.s32.totalorder %v94, 113
    %v375 = vsel %vm374, %v367, %v371
    %v376 = vsel %vm374, %v369, %v373
    %v377 = vsel %vm374, %v363, %v367
    %v378 = vsel %vm374, %v365, %v369
    %v379 = vsel %vm374, %v359, %v363
    %v380 = vsel %vm374, %v361, %v365
    %v381 = vsel %vm374, %v371, %v359
    %v382 = vsel %vm374, %v373, %v361
    %s383 = scalar_lea.vmem [#allocation5], 6
    %v384 = vld [vmem:[%s383] ss:$8 sm:$0xf]
    %v386 = vlaneseq
    %v387 = vshrl.u32 %v386, 7
    %v388 = vsub.s32 0, %v387
    %v389 = vrot.slane %v384, %v388
    %v390 = vlaneseq
    %v391 = vshrl.u32 %v390, 7
    %v392 = vsub.s32 1, %v391
    %v393 = vrot.slane %v384, %v392
    %v394 = vlaneseq
    %v395 = vshrl.u32 %v394, 7
    %v396 = vsub.s32 2, %v395
    %v397 = vrot.slane %v384, %v396
    %v398 = vlaneseq
    %v399 = vshrl.u32 %v398, 7
    %v400 = vsub.s32 3, %v399
    %v401 = vrot.slane %v384, %v400
    %v406 = vmul.f32 %v379, %v389
    %v407 = vmul.f32 %v377, %v393
    %v408 = vmul.f32 %v375, %v397
    %v409 = vmul.f32 %v381, %v401
    %v410 = vmul.f32 %v380, %v389
    %v411 = vmul.f32 %v378, %v393
    %v412 = vmul.f32 %v376, %v397
    %v413 = vmul.f32 %v382, %v401
    %414 = vrot.lane.b32.xlu0 %v69, 112
    %v415 = vpop.permute.xlu0 %414
    %416 = vrot.lane.b32.xlu0 %v73, 112
    %v417 = vpop.permute.xlu0 %416
    %418 = vrot.lane.b32.xlu0 %v70, 112
    %v419 = vpop.permute.xlu0 %418
    %420 = vrot.lane.b32.xlu0 %v74, 112
    %v421 = vpop.permute.xlu0 %420
    %422 = vrot.lane.b32.xlu0 %v71, 112
    %v423 = vpop.permute.xlu0 %422
    %424 = vrot.lane.b32.xlu0 %v75, 112
    %v425 = vpop.permute.xlu0 %424
    %426 = vrot.lane.b32.xlu0 %v72, 112
    %v427 = vpop.permute.xlu0 %426
    %428 = vrot.lane.b32.xlu0 %v76, 112
    %v429 = vpop.permute.xlu0 %428
    %vm430 = vcmp.lt.s32.totalorder %v94, 112
    %v431 = vsel %vm430, %v423, %v427
    %v432 = vsel %vm430, %v425, %v429
    %v433 = vsel %vm430, %v419, %v423
    %v434 = vsel %vm430, %v421, %v425
    %v435 = vsel %vm430, %v415, %v419
    %v436 = vsel %vm430, %v417, %v421
    %v437 = vsel %vm430, %v427, %v415
    %v438 = vsel %vm430, %v429, %v417
    %s439 = scalar_lea.vmem [#allocation5], 7
    %v440 = vld [vmem:[%s439] ss:$8 sm:$0xf]
    %v442 = vlaneseq
    %v443 = vshrl.u32 %v442, 7
    %v444 = vsub.s32 0, %v443
    %v445 = vrot.slane %v440, %v444
    %v446 = vlaneseq
    %v447 = vshrl.u32 %v446, 7
    %v448 = vsub.s32 1, %v447
    %v449 = vrot.slane %v440, %v448
    %v450 = vlaneseq
    %v451 = vshrl.u32 %v450, 7
    %v452 = vsub.s32 2, %v451
    %v453 = vrot.slane %v440, %v452
    %v454 = vlaneseq
    %v455 = vshrl.u32 %v454, 7
    %v456 = vsub.s32 3, %v455
    %v457 = vrot.slane %v440, %v456
    %v462 = vmul.f32 %v435, %v445
    %v463 = vmul.f32 %v433, %v449
    %v464 = vmul.f32 %v431, %v453
    %v465 = vmul.f32 %v437, %v457
    %v466 = vmul.f32 %v436, %v445
    %v467 = vmul.f32 %v434, %v449
    %v468 = vmul.f32 %v432, %v453
    %v469 = vmul.f32 %v438, %v457
    %470 = vrot.lane.b32.xlu0 %v69, 111
    %v471 = vpop.permute.xlu0 %470
    %472 = vrot.lane.b32.xlu0 %v73, 111
    %v473 = vpop.permute.xlu0 %472
    %474 = vrot.lane.b32.xlu0 %v70, 111
    %v475 = vpop.permute.xlu0 %474
    %476 = vrot.lane.b32.xlu0 %v74, 111
    %v477 = vpop.permute.xlu0 %476
    %478 = vrot.lane.b32.xlu0 %v71, 111
    %v479 = vpop.permute.xlu0 %478
    %480 = vrot.lane.b32.xlu0 %v75, 111
    %v481 = vpop.permute.xlu0 %480
    %482 = vrot.lane.b32.xlu0 %v72, 111
    %v483 = vpop.permute.xlu0 %482
    %484 = vrot.lane.b32.xlu0 %v76, 111
    %v485 = vpop.permute.xlu0 %484
    %vm486 = vcmp.lt.s32.totalorder %v94, 111
    %v487 = vsel %vm486, %v479, %v483
    %v488 = vsel %vm486, %v481, %v485
    %v489 = vsel %vm486, %v475, %v479
    %v490 = vsel %vm486, %v477, %v481
    %v491 = vsel %vm486, %v471, %v475
    %v492 = vsel %vm486, %v473, %v477
    %v493 = vsel %vm486, %v483, %v471
    %v494 = vsel %vm486, %v485, %v473
    %s495 = scalar_lea.vmem [#allocation5], 32
    %v496 = vld [vmem:[%s495] ss:$8 sm:$0xf]
    %v498 = vlaneseq
    %v499 = vshrl.u32 %v498, 7
    %v500 = vsub.s32 0, %v499
    %v501 = vrot.slane %v496, %v500
    %v502 = vlaneseq
    %v503 = vshrl.u32 %v502, 7
    %v504 = vsub.s32 1, %v503
    %v505 = vrot.slane %v496, %v504
    %v506 = vlaneseq
    %v507 = vshrl.u32 %v506, 7
    %v508 = vsub.s32 2, %v507
    %v509 = vrot.slane %v496, %v508
    %v510 = vlaneseq
    %v511 = vshrl.u32 %v510, 7
    %v512 = vsub.s32 3, %v511
    %v513 = vrot.slane %v496, %v512
    %v518 = vmul.f32 %v491, %v501
    %v519 = vmul.f32 %v489, %v505
    %v520 = vmul.f32 %v487, %v509
    %v521 = vmul.f32 %v493, %v513
    %v522 = vmul.f32 %v492, %v501
    %v523 = vmul.f32 %v490, %v505
    %v524 = vmul.f32 %v488, %v509
    %v525 = vmul.f32 %v494, %v513
    %v526 = vpack.c.bf16 %v130, %v126
    %v527 = vpack.c.bf16 %v131, %v127
    %v528 = vpack.c.bf16 %v132, %v128
    %v529 = vpack.c.bf16 %v133, %v129
    %v530 = vpack.c.bf16 %v186, %v182
    %v531 = vpack.c.bf16 %v187, %v183
    %v532 = vpack.c.bf16 %v188, %v184
    %v533 = vpack.c.bf16 %v189, %v185
    %v534 = vpack.c.bf16 %v242, %v238
    %v535 = vpack.c.bf16 %v243, %v239
    %v536 = vpack.c.bf16 %v244, %v240
    %v537 = vpack.c.bf16 %v245, %v241
    %v538 = vpack.c.bf16 %v298, %v294
    %v539 = vpack.c.bf16 %v299, %v295
    %v540 = vpack.c.bf16 %v300, %v296
    %v541 = vpack.c.bf16 %v301, %v297
    %v542 = vpack.c.bf16 %v73, %v69
    %v543 = vpack.c.bf16 %v74, %v70
    %v544 = vpack.c.bf16 %v75, %v71
    %v545 = vpack.c.bf16 %v76, %v72
    %v546 = vpack.c.bf16 %v354, %v350
    %v547 = vpack.c.bf16 %v355, %v351
    %v548 = vpack.c.bf16 %v356, %v352
    %v549 = vpack.c.bf16 %v357, %v353
    %v550 = vpack.c.bf16 %v410, %v406
    %v551 = vpack.c.bf16 %v411, %v407
    %v552 = vpack.c.bf16 %v412, %v408
    %v553 = vpack.c.bf16 %v413, %v409
    %v554 = vpack.c.bf16 %v466, %v462
    %v555 = vpack.c.bf16 %v467, %v463
    %v556 = vpack.c.bf16 %v468, %v464
    %v557 = vpack.c.bf16 %v469, %v465
    %v558 = vpack.c.bf16 %v522, %v518
    %v559 = vpack.c.bf16 %v523, %v519
    %v560 = vpack.c.bf16 %v524, %v520
    %v561 = vpack.c.bf16 %v525, %v521
    %v562 = vld [vmem:[%s1] sm:$0xff]
    %v563 = vld [vmem:[%s1 + $0x8] sm:$0xff]
    %v564 = vld [vmem:[%s2] sm:$0xff]
    %v565 = vld [vmem:[%s2 + $0x8] sm:$0xff]
    %567 = vset.pattern.permute.xlu0 0
    %568 = vperm.xlu0 %567, %v564
    %v569 = vpop.permute.xlu0 %568
    %572 = vset.pattern.permute.xlu0 0
    %573 = vperm.xlu0 %572, %v565
    %v574 = vpop.permute.xlu0 %573
    %v578 = vunpack.c.l.b16 %v562
    %v579 = vunpack.c.h.b16 %v562
    %v580 = vunpack.c.l.b16 %v563
    %v581 = vunpack.c.h.b16 %v563
    %v582 = vpack.c.b16 %v580, %v578
    %v583 = vpack.c.b16 %v581, %v579
    %vm585 = vcmask 130048
    %v587 = vsel %vm585, %v583, 0
    %589 = vmatprep.subr.bf16.mxu0 %v555
    %590 = vmatpush1.bf16.msra.mxu0 %v554
    %591 = vmatprep.subr.bf16.mxu0 %v551
    %592 = vmatpush1.bf16.msra.mxu0 %v550
    %593 = vmatprep.subr.bf16.mxu0 %v547
    %594 = vmatpush1.bf16.msra.mxu0 %v546
    %595 = vmatprep.subr.bf16.mxu0 %v543
    %596 = vmatpush1.bf16.msra.mxu0 %v542
    %597 = vmatprep.subr.bf16.mxu0 %v539
    %598 = vmatpush1.bf16.msra.mxu0 %v538
    %599 = vmatprep.subr.bf16.mxu0 %v535
    %600 = vmatpush1.bf16.msra.mxu0 %v534
    %601 = vmatprep.subr.bf16.mxu0 %v531
    %602 = vmatpush1.bf16.msra.mxu0 %v530
    %603 = vmatprep.subr.bf16.mxu0 %v527
    %604 = vmatpush1.bf16.msra.mxu0 %v526
    %605 = vmatprep.subr.bf16.mxu0 0
    %606 = vmatpush2.bf16.msra.mxu0 0
    %607 = vmatprep.subr.bf16.mxu0 0
    %608 = vmatpush2.bf16.msra.mxu0 0
    %609 = vmatprep.subr.bf16.mxu0 0
    %610 = vmatpush2.bf16.msra.mxu0 0
    %611 = vmatprep.subr.bf16.mxu0 0
    %612 = vmatpush2.bf16.msra.mxu0 0
    %613 = vmatprep.subr.bf16.mxu0 0
    %614 = vmatpush2.bf16.msra.mxu0 0
    %615 = vmatprep.subr.bf16.mxu0 0
    %616 = vmatpush2.bf16.msra.mxu0 0
    %617 = vmatprep.subr.bf16.mxu0 0
    %618 = vmatpush2.bf16.msra.mxu0 0
    %619 = vmatprep.subr.bf16.mxu0 %v559
    %620 = vmatpush2.bf16.msra.mxu0 %v558
    %621 = vmatprep.mubr.bf16.mxu0 %v587
    %622 = vmatmul.mubr.bf16.gmra.mxu0 %v582
    %v623 = vpop.f32.mrf.mxu0
    %v624 = vadd.f32 %v569, %v623
    %v625 = vpop.f32.mrf.mxu0
    %v626 = vadd.f32 %v569, %v625
    %v627 = vpop.f32.mrf.mxu0
    %v628 = vadd.f32 %v574, %v627
    %v629 = vpop.f32.mrf.mxu0
    %v630 = vadd.f32 %v574, %v629
    %631 = vdwg.mxu0
    %632 = vmatprep.subr.bf16.mxu0 %v557
    %633 = vmatpush1.bf16.msra.mxu0 %v556
    %634 = vmatprep.subr.bf16.mxu0 %v553
    %635 = vmatpush1.bf16.msra.mxu0 %v552
    %636 = vmatprep.subr.bf16.mxu0 %v549
    %637 = vmatpush1.bf16.msra.mxu0 %v548
    %638 = vmatprep.subr.bf16.mxu0 %v545
    %639 = vmatpush1.bf16.msra.mxu0 %v544
    %640 = vmatprep.subr.bf16.mxu0 %v541
    %641 = vmatpush1.bf16.msra.mxu0 %v540
    %642 = vmatprep.subr.bf16.mxu0 %v537
    %643 = vmatpush1.bf16.msra.mxu0 %v536
    %644 = vmatprep.subr.bf16.mxu0 %v533
    %645 = vmatpush1.bf16.msra.mxu0 %v532
    %646 = vmatprep.subr.bf16.mxu0 %v529
    %647 = vmatpush1.bf16.msra.mxu0 %v528
    %648 = vmatprep.subr.bf16.mxu0 0
    %649 = vmatpush2.bf16.msra.mxu0 0
    %650 = vmatprep.subr.bf16.mxu0 0
    %651 = vmatpush2.bf16.msra.mxu0 0
    %652 = vmatprep.subr.bf16.mxu0 0
    %653 = vmatpush2.bf16.msra.mxu0 0
    %654 = vmatprep.subr.bf16.mxu0 0
    %655 = vmatpush2.bf16.msra.mxu0 0
    %656 = vmatprep.subr.bf16.mxu0 0
    %657 = vmatpush2.bf16.msra.mxu0 0
    %658 = vmatprep.subr.bf16.mxu0 0
    %659 = vmatpush2.bf16.msra.mxu0 0
    %660 = vmatprep.subr.bf16.mxu0 0
    %661 = vmatpush2.bf16.msra.mxu0 0
    %662 = vmatprep.subr.bf16.mxu0 %v561
    %663 = vmatpush2.bf16.msra.mxu0 %v560
    %664 = vmatprep.mubr.bf16.mxu0 %v587
    %665 = vmatmul.mubr.bf16.gmra.mxu0 %v582
    %v666 = vpop.f32.mrf.mxu0
    %v667 = vadd.f32 %v569, %v666
    %v668 = vpop.f32.mrf.mxu0
    %v669 = vadd.f32 %v569, %v668
    %v670 = vpop.f32.mrf.mxu0
    %v671 = vadd.f32 %v574, %v670
    %v672 = vpop.f32.mrf.mxu0
    %v673 = vadd.f32 %v574, %v672
    %674 = vdwg.mxu0
    %v675 = vmax.f32 %v624, 0.0
    %v676 = vmax.f32 %v626, 0.0
    %v677 = vmax.f32 %v667, 0.0
    %v678 = vmax.f32 %v669, 0.0
    %v679 = vmax.f32 %v628, 0.0
    %v680 = vmax.f32 %v630, 0.0
    %v681 = vmax.f32 %v671, 0.0
    %v682 = vmax.f32 %v673, 0.0
    %683 = vrot.lane.b32.xlu0 %v675, 34
    %v684 = vpop.permute.xlu0 %683
    %685 = vrot.lane.b32.xlu0 %v679, 34
    %v686 = vpop.permute.xlu0 %685
    %687 = vrot.lane.b32.xlu0 %v676, 34
    %v688 = vpop.permute.xlu0 %687
    %689 = vrot.lane.b32.xlu0 %v680, 34
    %v690 = vpop.permute.xlu0 %689
    %691 = vrot.lane.b32.xlu0 %v677, 34
    %v692 = vpop.permute.xlu0 %691
    %693 = vrot.lane.b32.xlu0 %v681, 34
    %v694 = vpop.permute.xlu0 %693
    %695 = vrot.lane.b32.xlu0 %v678, 34
    %v696 = vpop.permute.xlu0 %695
    %697 = vrot.lane.b32.xlu0 %v682, 34
    %v698 = vpop.permute.xlu0 %697
    %vm699 = vcmp.lt.s32.totalorder %v94, 34
    %v700 = vsel %vm699, %v692, %v696
    %v701 = vsel %vm699, %v694, %v698
    %v702 = vsel %vm699, %v688, %v692
    %v703 = vsel %vm699, %v690, %v694
    %v704 = vsel %vm699, %v684, %v688
    %v705 = vsel %vm699, %v686, %v690
    %v706 = vsel %vm699, %v696, %v684
    %v707 = vsel %vm699, %v698, %v686
    %v708 = vld [vmem:[#allocation7] ss:$8 sm:$0xf]
    %v710 = vlaneseq
    %v711 = vshrl.u32 %v710, 7
    %v712 = vsub.s32 0, %v711
    %v713 = vrot.slane %v708, %v712
    %v714 = vlaneseq
    %v715 = vshrl.u32 %v714, 7
    %v716 = vsub.s32 1, %v715
    %v717 = vrot.slane %v708, %v716
    %v718 = vlaneseq
    %v719 = vshrl.u32 %v718, 7
    %v720 = vsub.s32 2, %v719
    %v721 = vrot.slane %v708, %v720
    %v722 = vlaneseq
    %v723 = vshrl.u32 %v722, 7
    %v724 = vsub.s32 3, %v723
    %v725 = vrot.slane %v708, %v724
    %v730 = vmul.f32 %v706, %v713
    %v731 = vmul.f32 %v704, %v717
    %v732 = vmul.f32 %v702, %v721
    %v733 = vmul.f32 %v700, %v725
    %v734 = vmul.f32 %v707, %v713
    %v735 = vmul.f32 %v705, %v717
    %v736 = vmul.f32 %v703, %v721
    %v737 = vmul.f32 %v701, %v725
    %738 = vrot.lane.b32.xlu0 %v675, 32
    %v739 = vpop.permute.xlu0 %738
    %740 = vrot.lane.b32.xlu0 %v679, 32
    %v741 = vpop.permute.xlu0 %740
    %742 = vrot.lane.b32.xlu0 %v676, 32
    %v743 = vpop.permute.xlu0 %742
    %744 = vrot.lane.b32.xlu0 %v680, 32
    %v745 = vpop.permute.xlu0 %744
    %746 = vrot.lane.b32.xlu0 %v677, 32
    %v747 = vpop.permute.xlu0 %746
    %748 = vrot.lane.b32.xlu0 %v681, 32
    %v749 = vpop.permute.xlu0 %748
    %750 = vrot.lane.b32.xlu0 %v678, 32
    %v751 = vpop.permute.xlu0 %750
    %752 = vrot.lane.b32.xlu0 %v682, 32
    %v753 = vpop.permute.xlu0 %752
    %vm754 = vcmp.lt.s32.totalorder %v94, 32
    %v755 = vsel %vm754, %v747, %v751
    %v756 = vsel %vm754, %v749, %v753
    %v757 = vsel %vm754, %v743, %v747
    %v758 = vsel %vm754, %v745, %v749
    %v759 = vsel %vm754, %v739, %v743
    %v760 = vsel %vm754, %v741, %v745
    %v761 = vsel %vm754, %v751, %v739
    %v762 = vsel %vm754, %v753, %v741
    %s763 = scalar_lea.vmem [#allocation7], 1
    %v764 = vld [vmem:[%s763] ss:$8 sm:$0xf]
    %v766 = vlaneseq
    %v767 = vshrl.u32 %v766, 7
    %v768 = vsub.s32 0, %v767
    %v769 = vrot.slane %v764, %v768
    %v770 = vlaneseq
    %v771 = vshrl.u32 %v770, 7
    %v772 = vsub.s32 1, %v771
    %v773 = vrot.slane %v764, %v772
    %v774 = vlaneseq
    %v775 = vshrl.u32 %v774, 7
    %v776 = vsub.s32 2, %v775
    %v777 = vrot.slane %v764, %v776
    %v778 = vlaneseq
    %v779 = vshrl.u32 %v778, 7
    %v780 = vsub.s32 3, %v779
    %v781 = vrot.slane %v764, %v780
    %v786 = vmul.f32 %v761, %v769
    %v787 = vmul.f32 %v759, %v773
    %v788 = vmul.f32 %v757, %v777
    %v789 = vmul.f32 %v755, %v781
    %v790 = vmul.f32 %v762, %v769
    %v791 = vmul.f32 %v760, %v773
    %v792 = vmul.f32 %v758, %v777
    %v793 = vmul.f32 %v756, %v781
    %794 = vrot.lane.b32.xlu0 %v675, 30
    %v795 = vpop.permute.xlu0 %794
    %796 = vrot.lane.b32.xlu0 %v679, 30
    %v797 = vpop.permute.xlu0 %796
    %798 = vrot.lane.b32.xlu0 %v676, 30
    %v799 = vpop.permute.xlu0 %798
    %800 = vrot.lane.b32.xlu0 %v680, 30
    %v801 = vpop.permute.xlu0 %800
    %802 = vrot.lane.b32.xlu0 %v677, 30
    %v803 = vpop.permute.xlu0 %802
    %804 = vrot.lane.b32.xlu0 %v681, 30
    %v805 = vpop.permute.xlu0 %804
    %806 = vrot.lane.b32.xlu0 %v678, 30
    %v807 = vpop.permute.xlu0 %806
    %808 = vrot.lane.b32.xlu0 %v682, 30
    %v809 = vpop.permute.xlu0 %808
    %vm810 = vcmp.lt.s32.totalorder %v94, 30
    %v811 = vsel %vm810, %v803, %v807
    %v812 = vsel %vm810, %v805, %v809
    %v813 = vsel %vm810, %v799, %v803
    %v814 = vsel %vm810, %v801, %v805
    %v815 = vsel %vm810, %v795, %v799
    %v816 = vsel %vm810, %v797, %v801
    %v817 = vsel %vm810, %v807, %v795
    %v818 = vsel %vm810, %v809, %v797
    %s819 = scalar_lea.vmem [#allocation7], 2
    %v820 = vld [vmem:[%s819] ss:$8 sm:$0xf]
    %v822 = vlaneseq
    %v823 = vshrl.u32 %v822, 7
    %v824 = vsub.s32 0, %v823
    %v825 = vrot.slane %v820, %v824
    %v826 = vlaneseq
    %v827 = vshrl.u32 %v826, 7
    %v828 = vsub.s32 1, %v827
    %v829 = vrot.slane %v820, %v828
    %v830 = vlaneseq
    %v831 = vshrl.u32 %v830, 7
    %v832 = vsub.s32 2, %v831
    %v833 = vrot.slane %v820, %v832
    %v834 = vlaneseq
    %v835 = vshrl.u32 %v834, 7
    %v836 = vsub.s32 3, %v835
    %v837 = vrot.slane %v820, %v836
    %v842 = vmul.f32 %v817, %v825
    %v843 = vmul.f32 %v815, %v829
    %v844 = vmul.f32 %v813, %v833
    %v845 = vmul.f32 %v811, %v837
    %v846 = vmul.f32 %v818, %v825
    %v847 = vmul.f32 %v816, %v829
    %v848 = vmul.f32 %v814, %v833
    %v849 = vmul.f32 %v812, %v837
    %850 = vrot.lane.b32.xlu0 %v675, 2
    %v851 = vpop.permute.xlu0 %850
    %852 = vrot.lane.b32.xlu0 %v679, 2
    %v853 = vpop.permute.xlu0 %852
    %854 = vrot.lane.b32.xlu0 %v676, 2
    %v855 = vpop.permute.xlu0 %854
    %856 = vrot.lane.b32.xlu0 %v680, 2
    %v857 = vpop.permute.xlu0 %856
    %858 = vrot.lane.b32.xlu0 %v677, 2
    %v859 = vpop.permute.xlu0 %858
    %860 = vrot.lane.b32.xlu0 %v681, 2
    %v861 = vpop.permute.xlu0 %860
    %862 = vrot.lane.b32.xlu0 %v678, 2
    %v863 = vpop.permute.xlu0 %862
    %864 = vrot.lane.b32.xlu0 %v682, 2
    %v865 = vpop.permute.xlu0 %864
    %vm866 = vcmp.lt.s32.totalorder %v94, 2
    %v867 = vsel %vm866, %v859, %v863
    %v868 = vsel %vm866, %v861, %v865
    %v869 = vsel %vm866, %v855, %v859
    %v870 = vsel %vm866, %v857, %v861
    %v871 = vsel %vm866, %v851, %v855
    %v872 = vsel %vm866, %v853, %v857
    %v873 = vsel %vm866, %v863, %v851
    %v874 = vsel %vm866, %v865, %v853
    %s875 = scalar_lea.vmem [#allocation7], 3
    %v876 = vld [vmem:[%s875] ss:$8 sm:$0xf]
    %v878 = vlaneseq
    %v879 = vshrl.u32 %v878, 7
    %v880 = vsub.s32 0, %v879
    %v881 = vrot.slane %v876, %v880
    %v882 = vlaneseq
    %v883 = vshrl.u32 %v882, 7
    %v884 = vsub.s32 1, %v883
    %v885 = vrot.slane %v876, %v884
    %v886 = vlaneseq
    %v887 = vshrl.u32 %v886, 7
    %v888 = vsub.s32 2, %v887
    %v889 = vrot.slane %v876, %v888
    %v890 = vlaneseq
    %v891 = vshrl.u32 %v890, 7
    %v892 = vsub.s32 3, %v891
    %v893 = vrot.slane %v876, %v892
    %v898 = vmul.f32 %v873, %v881
    %v899 = vmul.f32 %v871, %v885
    %v900 = vmul.f32 %v869, %v889
    %v901 = vmul.f32 %v867, %v893
    %v902 = vmul.f32 %v874, %v881
    %v903 = vmul.f32 %v872, %v885
    %v904 = vmul.f32 %v870, %v889
    %v905 = vmul.f32 %v868, %v893
    %906 = vrot.lane.b32.xlu0 %v675, 126
    %v907 = vpop.permute.xlu0 %906
    %908 = vrot.lane.b32.xlu0 %v679, 126
    %v909 = vpop.permute.xlu0 %908
    %910 = vrot.lane.b32.xlu0 %v676, 126
    %v911 = vpop.permute.xlu0 %910
    %912 = vrot.lane.b32.xlu0 %v680, 126
    %v913 = vpop.permute.xlu0 %912
    %914 = vrot.lane.b32.xlu0 %v677, 126
    %v915 = vpop.permute.xlu0 %914
    %916 = vrot.lane.b32.xlu0 %v681, 126
    %v917 = vpop.permute.xlu0 %916
    %918 = vrot.lane.b32.xlu0 %v678, 126
    %v919 = vpop.permute.xlu0 %918
    %920 = vrot.lane.b32.xlu0 %v682, 126
    %v921 = vpop.permute.xlu0 %920
    %vm922 = vcmp.lt.s32.totalorder %v94, 126
    %v923 = vsel %vm922, %v915, %v919
    %v924 = vsel %vm922, %v917, %v921
    %v925 = vsel %vm922, %v911, %v915
    %v926 = vsel %vm922, %v913, %v917
    %v927 = vsel %vm922, %v907, %v911
    %v928 = vsel %vm922, %v909, %v913
    %v929 = vsel %vm922, %v919, %v907
    %v930 = vsel %vm922, %v921, %v909
    %s931 = scalar_lea.vmem [#allocation7], 5
    %v932 = vld [vmem:[%s931] ss:$8 sm:$0xf]
    %v934 = vlaneseq
    %v935 = vshrl.u32 %v934, 7
    %v936 = vsub.s32 0, %v935
    %v937 = vrot.slane %v932, %v936
    %v938 = vlaneseq
    %v939 = vshrl.u32 %v938, 7
    %v940 = vsub.s32 1, %v939
    %v941 = vrot.slane %v932, %v940
    %v942 = vlaneseq
    %v943 = vshrl.u32 %v942, 7
    %v944 = vsub.s32 2, %v943
    %v945 = vrot.slane %v932, %v944
    %v946 = vlaneseq
    %v947 = vshrl.u32 %v946, 7
    %v948 = vsub.s32 3, %v947
    %v949 = vrot.slane %v932, %v948
    %v954 = vmul.f32 %v927, %v937
    %v955 = vmul.f32 %v925, %v941
    %v956 = vmul.f32 %v923, %v945
    %v957 = vmul.f32 %v929, %v949
    %v958 = vmul.f32 %v928, %v937
    %v959 = vmul.f32 %v926, %v941
    %v960 = vmul.f32 %v924, %v945
    %v961 = vmul.f32 %v930, %v949
    %962 = vrot.lane.b32.xlu0 %v675, 98
    %v963 = vpop.permute.xlu0 %962
    %964 = vrot.lane.b32.xlu0 %v679, 98
    %v965 = vpop.permute.xlu0 %964
    %966 = vrot.lane.b32.xlu0 %v676, 98
    %v967 = vpop.permute.xlu0 %966
    %968 = vrot.lane.b32.xlu0 %v680, 98
    %v969 = vpop.permute.xlu0 %968
    %970 = vrot.lane.b32.xlu0 %v677, 98
    %v971 = vpop.permute.xlu0 %970
    %972 = vrot.lane.b32.xlu0 %v681, 98
    %v973 = vpop.permute.xlu0 %972
    %974 = vrot.lane.b32.xlu0 %v678, 98
    %v975 = vpop.permute.xlu0 %974
    %976 = vrot.lane.b32.xlu0 %v682, 98
    %v977 = vpop.permute.xlu0 %976
    %vm978 = vcmp.lt.s32.totalorder %v94, 98
    %v979 = vsel %vm978, %v971, %v975
    %v980 = vsel %vm978, %v973, %v977
    %v981 = vsel %vm978, %v967, %v971
    %v982 = vsel %vm978, %v969, %v973
    %v983 = vsel %vm978, %v963, %v967
    %v984 = vsel %vm978, %v965, %v969
    %v985 = vsel %vm978, %v975, %v963
    %v986 = vsel %vm978, %v977, %v965
    %s987 = scalar_lea.vmem [#allocation7], 6
    %v988 = vld [vmem:[%s987] ss:$8 sm:$0xf]
    %v990 = vlaneseq
    %v991 = vshrl.u32 %v990, 7
    %v992 = vsub.s32 0, %v991
    %v993 = vrot.slane %v988, %v992
    %v994 = vlaneseq
    %v995 = vshrl.u32 %v994, 7
    %v996 = vsub.s32 1, %v995
    %v997 = vrot.slane %v988, %v996
    %v998 = vlaneseq
    %v999 = vshrl.u32 %v998, 7
    %v1000 = vsub.s32 2, %v999
    %v1001 = vrot.slane %v988, %v1000
    %v1002 = vlaneseq
    %v1003 = vshrl.u32 %v1002, 7
    %v1004 = vsub.s32 3, %v1003
    %v1005 = vrot.slane %v988, %v1004
    %v1010 = vmul.f32 %v983, %v993
    %v1011 = vmul.f32 %v981, %v997
    %v1012 = vmul.f32 %v979, %v1001
    %v1013 = vmul.f32 %v985, %v1005
    %v1014 = vmul.f32 %v984, %v993
    %v1015 = vmul.f32 %v982, %v997
    %v1016 = vmul.f32 %v980, %v1001
    %v1017 = vmul.f32 %v986, %v1005
    %1018 = vrot.lane.b32.xlu0 %v675, 96
    %v1019 = vpop.permute.xlu0 %1018
    %1020 = vrot.lane.b32.xlu0 %v679, 96
    %v1021 = vpop.permute.xlu0 %1020
    %1022 = vrot.lane.b32.xlu0 %v676, 96
    %v1023 = vpop.permute.xlu0 %1022
    %1024 = vrot.lane.b32.xlu0 %v680, 96
    %v1025 = vpop.permute.xlu0 %1024
    %1026 = vrot.lane.b32.xlu0 %v677, 96
    %v1027 = vpop.permute.xlu0 %1026
    %1028 = vrot.lane.b32.xlu0 %v681, 96
    %v1029 = vpop.permute.xlu0 %1028
    %1030 = vrot.lane.b32.xlu0 %v678, 96
    %v1031 = vpop.permute.xlu0 %1030
    %1032 = vrot.lane.b32.xlu0 %v682, 96
    %v1033 = vpop.permute.xlu0 %1032
    %vm1034 = vcmp.lt.s32.totalorder %v94, 96
    %v1035 = vsel %vm1034, %v1027, %v1031
    %v1036 = vsel %vm1034, %v1029, %v1033
    %v1037 = vsel %vm1034, %v1023, %v1027
    %v1038 = vsel %vm1034, %v1025, %v1029
    %v1039 = vsel %vm1034, %v1019, %v1023
    %v1040 = vsel %vm1034, %v1021, %v1025
    %v1041 = vsel %vm1034, %v1031, %v1019
    %v1042 = vsel %vm1034, %v1033, %v1021
    %s1043 = scalar_lea.vmem [#allocation7], 7
    %v1044 = vld [vmem:[%s1043] ss:$8 sm:$0xf]
    %v1046 = vlaneseq
    %v1047 = vshrl.u32 %v1046, 7
    %v1048 = vsub.s32 0, %v1047
    %v1049 = vrot.slane %v1044, %v1048
    %v1050 = vlaneseq
    %v1051 = vshrl.u32 %v1050, 7
    %v1052 = vsub.s32 1, %v1051
    %v1053 = vrot.slane %v1044, %v1052
    %v1054 = vlaneseq
    %v1055 = vshrl.u32 %v1054, 7
    %v1056 = vsub.s32 2, %v1055
    %v1057 = vrot.slane %v1044, %v1056
    %v1058 = vlaneseq
    %v1059 = vshrl.u32 %v1058, 7
    %v1060 = vsub.s32 3, %v1059
    %v1061 = vrot.slane %v1044, %v1060
    %v1066 = vmul.f32 %v1039, %v1049
    %v1067 = vmul.f32 %v1037, %v1053
    %v1068 = vmul.f32 %v1035, %v1057
    %v1069 = vmul.f32 %v1041, %v1061
    %v1070 = vmul.f32 %v1040, %v1049
    %v1071 = vmul.f32 %v1038, %v1053
    %v1072 = vmul.f32 %v1036, %v1057
    %v1073 = vmul.f32 %v1042, %v1061
    %1074 = vrot.lane.b32.xlu0 %v675, 94
    %v1075 = vpop.permute.xlu0 %1074
    %1076 = vrot.lane.b32.xlu0 %v679, 94
    %v1077 = vpop.permute.xlu0 %1076
    %1078 = vrot.lane.b32.xlu0 %v676, 94
    %v1079 = vpop.permute.xlu0 %1078
    %1080 = vrot.lane.b32.xlu0 %v680, 94
    %v1081 = vpop.permute.xlu0 %1080
    %1082 = vrot.lane.b32.xlu0 %v677, 94
    %v1083 = vpop.permute.xlu0 %1082
    %1084 = vrot.lane.b32.xlu0 %v681, 94
    %v1085 = vpop.permute.xlu0 %1084
    %1086 = vrot.lane.b32.xlu0 %v678, 94
    %v1087 = vpop.permute.xlu0 %1086
    %1088 = vrot.lane.b32.xlu0 %v682, 94
    %v1089 = vpop.permute.xlu0 %1088
    %vm1090 = vcmp.lt.s32.totalorder %v94, 94
    %v1091 = vsel %vm1090, %v1083, %v1087
    %v1092 = vsel %vm1090, %v1085, %v1089
    %v1093 = vsel %vm1090, %v1079, %v1083
    %v1094 = vsel %vm1090, %v1081, %v1085
    %v1095 = vsel %vm1090, %v1075, %v1079
    %v1096 = vsel %vm1090, %v1077, %v1081
    %v1097 = vsel %vm1090, %v1087, %v1075
    %v1098 = vsel %vm1090, %v1089, %v1077
    %s1099 = scalar_lea.vmem [#allocation7], 32
    %v1100 = vld [vmem:[%s1099] ss:$8 sm:$0xf]
    %v1102 = vlaneseq
    %v1103 = vshrl.u32 %v1102, 7
    %v1104 = vsub.s32 0, %v1103
    %v1105 = vrot.slane %v1100, %v1104
    %v1106 = vlaneseq
    %v1107 = vshrl.u32 %v1106, 7
    %v1108 = vsub.s32 1, %v1107
    %v1109 = vrot.slane %v1100, %v1108
    %v1110 = vlaneseq
    %v1111 = vshrl.u32 %v1110, 7
    %v1112 = vsub.s32 2, %v1111
    %v1113 = vrot.slane %v1100, %v1112
    %v1114 = vlaneseq
    %v1115 = vshrl.u32 %v1114, 7
    %v1116 = vsub.s32 3, %v1115
    %v1117 = vrot.slane %v1100, %v1116
    %v1122 = vmul.f32 %v1095, %v1105
    %v1123 = vmul.f32 %v1093, %v1109
    %v1124 = vmul.f32 %v1091, %v1113
    %v1125 = vmul.f32 %v1097, %v1117
    %v1126 = vmul.f32 %v1096, %v1105
    %v1127 = vmul.f32 %v1094, %v1109
    %v1128 = vmul.f32 %v1092, %v1113
    %v1129 = vmul.f32 %v1098, %v1117
    %v1130 = vpack.c.bf16 %v734, %v730
    %v1131 = vpack.c.bf16 %v735, %v731
    %v1132 = vpack.c.bf16 %v736, %v732
    %v1133 = vpack.c.bf16 %v737, %v733
    %v1134 = vpack.c.bf16 %v790, %v786
    %v1135 = vpack.c.bf16 %v791, %v787
    %v1136 = vpack.c.bf16 %v792, %v788
    %v1137 = vpack.c.bf16 %v793, %v789
    %v1138 = vpack.c.bf16 %v846, %v842
    %v1139 = vpack.c.bf16 %v847, %v843
    %v1140 = vpack.c.bf16 %v848, %v844
    %v1141 = vpack.c.bf16 %v849, %v845
    %v1142 = vpack.c.bf16 %v902, %v898
    %v1143 = vpack.c.bf16 %v903, %v899
    %v1144 = vpack.c.bf16 %v904, %v900
    %v1145 = vpack.c.bf16 %v905, %v901
    %v1146 = vpack.c.bf16 %v679, %v675
    %v1147 = vpack.c.bf16 %v680, %v676
    %v1148 = vpack.c.bf16 %v681, %v677
    %v1149 = vpack.c.bf16 %v682, %v678
    %v1150 = vpack.c.bf16 %v958, %v954
    %v1151 = vpack.c.bf16 %v959, %v955
    %v1152 = vpack.c.bf16 %v960, %v956
    %v1153 = vpack.c.bf16 %v961, %v957
    %v1154 = vpack.c.bf16 %v1014, %v1010
    %v1155 = vpack.c.bf16 %v1015, %v1011
    %v1156 = vpack.c.bf16 %v1016, %v1012
    %v1157 = vpack.c.bf16 %v1017, %v1013
    %v1158 = vpack.c.bf16 %v1070, %v1066
    %v1159 = vpack.c.bf16 %v1071, %v1067
    %v1160 = vpack.c.bf16 %v1072, %v1068
    %v1161 = vpack.c.bf16 %v1073, %v1069
    %v1162 = vpack.c.bf16 %v1126, %v1122
    %v1163 = vpack.c.bf16 %v1127, %v1123
    %v1164 = vpack.c.bf16 %v1128, %v1124
    %v1165 = vpack.c.bf16 %v1129, %v1125
    %v1166 = vld [vmem:[%s4] sm:$0xff]
    %v1167 = vld [vmem:[%s4 + $0x8] sm:$0xff]
    %v1168 = vld [vmem:[%s5] sm:$0xff]
    %v1169 = vld [vmem:[%s5 + $0x8] sm:$0xff]
    %1171 = vset.pattern.permute.xlu0 0
    %1172 = vperm.xlu0 %1171, %v1168
    %v1173 = vpop.permute.xlu0 %1172
    %1176 = vset.pattern.permute.xlu0 0
    %1177 = vperm.xlu0 %1176, %v1169
    %v1178 = vpop.permute.xlu0 %1177
    %v1182 = vunpack.c.l.b16 %v1166
    %v1183 = vunpack.c.h.b16 %v1166
    %v1184 = vunpack.c.l.b16 %v1167
    %v1185 = vunpack.c.h.b16 %v1167
    %v1186 = vpack.c.b16 %v1184, %v1182
    %v1187 = vpack.c.b16 %v1185, %v1183
    %v1190 = vsel %vm585, %v1187, 0
    %1192 = vmatprep.subr.bf16.mxu0 %v1159
    %1193 = vmatpush1.bf16.msra.mxu0 %v1158
    %1194 = vmatprep.subr.bf16.mxu0 %v1155
    %1195 = vmatpush1.bf16.msra.mxu0 %v1154
    %1196 = vmatprep.subr.bf16.mxu0 %v1151
    %1197 = vmatpush1.bf16.msra.mxu0 %v1150
    %1198 = vmatprep.subr.bf16.mxu0 %v1147
    %1199 = vmatpush1.bf16.msra.mxu0 %v1146
    %1200 = vmatprep.subr.bf16.mxu0 %v1143
    %1201 = vmatpush1.bf16.msra.mxu0 %v1142
    %1202 = vmatprep.subr.bf16.mxu0 %v1139
    %1203 = vmatpush1.bf16.msra.mxu0 %v1138
    %1204 = vmatprep.subr.bf16.mxu0 %v1135
    %1205 = vmatpush1.bf16.msra.mxu0 %v1134
    %1206 = vmatprep.subr.bf16.mxu0 %v1131
    %1207 = vmatpush1.bf16.msra.mxu0 %v1130
    %1208 = vmatprep.subr.bf16.mxu0 0
    %1209 = vmatpush2.bf16.msra.mxu0 0
    %1210 = vmatprep.subr.bf16.mxu0 0
    %1211 = vmatpush2.bf16.msra.mxu0 0
    %1212 = vmatprep.subr.bf16.mxu0 0
    %1213 = vmatpush2.bf16.msra.mxu0 0
    %1214 = vmatprep.subr.bf16.mxu0 0
    %1215 = vmatpush2.bf16.msra.mxu0 0
    %1216 = vmatprep.subr.bf16.mxu0 0
    %1217 = vmatpush2.bf16.msra.mxu0 0
    %1218 = vmatprep.subr.bf16.mxu0 0
    %1219 = vmatpush2.bf16.msra.mxu0 0
    %1220 = vmatprep.subr.bf16.mxu0 0
    %1221 = vmatpush2.bf16.msra.mxu0 0
    %1222 = vmatprep.subr.bf16.mxu0 %v1163
    %1223 = vmatpush2.bf16.msra.mxu0 %v1162
    %1224 = vmatprep.mubr.bf16.mxu0 %v1190
    %1225 = vmatmul.mubr.bf16.gmra.mxu0 %v1186
    %v1226 = vpop.f32.mrf.mxu0
    %v1227 = vadd.f32 %v1173, %v1226
    %v1228 = vpop.f32.mrf.mxu0
    %v1229 = vadd.f32 %v1173, %v1228
    %v1230 = vpop.f32.mrf.mxu0
    %v1231 = vadd.f32 %v1178, %v1230
    %v1232 = vpop.f32.mrf.mxu0
    %v1233 = vadd.f32 %v1178, %v1232
    %1234 = vdwg.mxu0
    %1235 = vmatprep.subr.bf16.mxu0 %v1161
    %1236 = vmatpush1.bf16.msra.mxu0 %v1160
    %1237 = vmatprep.subr.bf16.mxu0 %v1157
    %1238 = vmatpush1.bf16.msra.mxu0 %v1156
    %1239 = vmatprep.subr.bf16.mxu0 %v1153
    %1240 = vmatpush1.bf16.msra.mxu0 %v1152
    %1241 = vmatprep.subr.bf16.mxu0 %v1149
    %1242 = vmatpush1.bf16.msra.mxu0 %v1148
    %1243 = vmatprep.subr.bf16.mxu0 %v1145
    %1244 = vmatpush1.bf16.msra.mxu0 %v1144
    %1245 = vmatprep.subr.bf16.mxu0 %v1141
    %1246 = vmatpush1.bf16.msra.mxu0 %v1140
    %1247 = vmatprep.subr.bf16.mxu0 %v1137
    %1248 = vmatpush1.bf16.msra.mxu0 %v1136
    %1249 = vmatprep.subr.bf16.mxu0 %v1133
    %1250 = vmatpush1.bf16.msra.mxu0 %v1132
    %1251 = vmatprep.subr.bf16.mxu0 0
    %1252 = vmatpush2.bf16.msra.mxu0 0
    %1253 = vmatprep.subr.bf16.mxu0 0
    %1254 = vmatpush2.bf16.msra.mxu0 0
    %1255 = vmatprep.subr.bf16.mxu0 0
    %1256 = vmatpush2.bf16.msra.mxu0 0
    %1257 = vmatprep.subr.bf16.mxu0 0
    %1258 = vmatpush2.bf16.msra.mxu0 0
    %1259 = vmatprep.subr.bf16.mxu0 0
    %1260 = vmatpush2.bf16.msra.mxu0 0
    %1261 = vmatprep.subr.bf16.mxu0 0
    %1262 = vmatpush2.bf16.msra.mxu0 0
    %1263 = vmatprep.subr.bf16.mxu0 0
    %1264 = vmatpush2.bf16.msra.mxu0 0
    %1265 = vmatprep.subr.bf16.mxu0 %v1165
    %1266 = vmatpush2.bf16.msra.mxu0 %v1164
    %1267 = vmatprep.mubr.bf16.mxu0 %v1190
    %1268 = vmatmul.mubr.bf16.gmra.mxu0 %v1186
    %v1269 = vpop.f32.mrf.mxu0
    %v1270 = vadd.f32 %v1173, %v1269
    %v1271 = vpop.f32.mrf.mxu0
    %v1272 = vadd.f32 %v1173, %v1271
    %v1273 = vpop.f32.mrf.mxu0
    %v1274 = vadd.f32 %v1178, %v1273
    %v1275 = vpop.f32.mrf.mxu0
    %v1276 = vadd.f32 %v1178, %v1275
    %1277 = vdwg.mxu0
    %v1278 = vadd.f32 %v69, %v1227
    %v1279 = vadd.f32 %v70, %v1229
    %v1280 = vadd.f32 %v71, %v1270
    %v1281 = vadd.f32 %v72, %v1272
    %v1282 = vadd.f32 %v73, %v1231
    %v1283 = vadd.f32 %v74, %v1233
    %v1284 = vadd.f32 %v75, %v1274
    %v1285 = vadd.f32 %v76, %v1276
    %v1286 = vmax.f32 %v1278, 0.0
    %v1287 = vmax.f32 %v1279, 0.0
    %v1288 = vmax.f32 %v1280, 0.0
    %v1289 = vmax.f32 %v1281, 0.0
    %v1290 = vmax.f32 %v1282, 0.0
    %v1291 = vmax.f32 %v1283, 0.0
    %v1292 = vmax.f32 %v1284, 0.0
    %v1293 = vmax.f32 %v1285, 0.0
    %1294 = vst [vmem:[#allocation8] sm:$0xff] %v1286
    %1295 = vst [vmem:[#allocation8 + $0x8] sm:$0xff] %v1287
    %1296 = vst [vmem:[#allocation8 + $0x10] sm:$0xff] %v1288
    %1297 = vst [vmem:[#allocation8 + $0x18] sm:$0xff] %v1289
    %1298 = vst [vmem:[#allocation8 + $0x20] sm:$0xff] %v1290
    %1299 = vst [vmem:[#allocation8 + $0x28] sm:$0xff] %v1291
    %1300 = vst [vmem:[#allocation8 + $0x30] sm:$0xff] %v1292
    %1301 = vst [vmem:[#allocation8 + $0x38] sm:$0xff] %v1293
    // Predicated region
    $region42: #{tpu_custom_call.1} parent=1 // pred_check
      _
    $region43: #{tpu_custom_call.1} parent=1 // pred_check_branch
      %1303 = sbr.rel (0) target = $region45
    $region44: #{tpu_custom_call.1} parent=1 // pred_region
      %s1305 = ssub.s32 1024, 1024
      %1306 = vsyncadd [#allocation4], %s1305
      %s1307 = sshll.u32 [#allocation8], 4
      %s1308 = int_to_ptr.vmem [resolvable:$true] %s1307
      %1313 = dma.vmem_to_hbm [thread:$0]  %s1308, 1024, %s7, [#allocation4], 512, 512, 32
    $region45: #{tpu_custom_call.1} parent=1 // pred_fallthru
      _
    // Predicated region
    $region46: #{tpu_custom_call.1} parent=1 // pred_check
      _
    $region47: #{tpu_custom_call.1} parent=1 // pred_check_branch
      %1315 = sbr.rel (0) target = $region49
    $region48: #{tpu_custom_call.1} parent=1 // pred_region
      %1316 = dma.done [#allocation4], 1024
    $region49: #{tpu_custom_call.1} parent=1 // pred_fallthru
      _
    %1317 = vsyncpa [#allocation3], 1
    %1318 = vsyncpa [#allocation6], 1
    %1319 = vsyncpa [#allocation4], 1

</llo_original>
